<compile_context>
chip_gen: v7x
topology: tpu7x:2x2x1
jax: 0.10.0
libtpu: 0.0.40
codegen_flags: <defaults>
</compile_context>

<pallas_src>
import functools

import jax
import jax.numpy as jnp
import numpy as np
from jax.experimental import pallas as pl
from jax.experimental.pallas import tpu as pltpu


# ----------------------------- Pallas kernel -------------------------------

def gru_sentiment_kernel(tok_ref, emb_ref, wih_ref, whh_ref, bx_ref, bhn_ref,
                         fcw_ref, fcb_ref, out_ref, x_ref, *, T, B, H):
    """Single-invocation embedding-gather + GRU forward + fc + sigmoid.

    tok_ref : (B, T)      int32  SMEM   token ids (batch-major)
    emb_ref : (V, E)      f32    VMEM   embedding table (row 0 == pad row)
    wih_ref : (E, 3H)     bf16   VMEM   fused input weights, gates (r, z, n)
    whh_ref : (H, 3H)     bf16   VMEM   fused hidden weights, gates (r, z, n)
    bx_ref  : (1, 3H)     f32    VMEM   b_ih with b_hh folded in for r/z
    bhn_ref : (1, H)      f32    VMEM   b_hn (stays inside the r * (.) term)
    fcw_ref : (1, H)      f32    VMEM   final linear weight (zero-padded)
    fcb_ref : (1,)        f32    SMEM   final linear bias
    out_ref : (B, 128)    f32    VMEM   sigmoid(fc(h_T)) broadcast over lanes
    x_ref   : (T*B, E)    f32    VMEM   scratch: time-major gathered embeddings

    H here is the lane-padded hidden size (128); padded lanes stay exactly 0.
    """
    # ---- In-kernel embedding gather, written time-major into scratch. ----
    for t in range(T):
        for b in range(B):
            tok = tok_ref[b, t]                                   # SMEM scalar
            x_ref[pl.ds(t * B + b, 1), :] = emb_ref[pl.ds(tok, 1), :]

    # ---- Hoisted input projections for ALL timesteps in one MXU call. ----
    gi_all = jnp.dot(x_ref[...].astype(jnp.bfloat16), wih_ref[...],
                     preferred_element_type=jnp.float32) + bx_ref[...]  # (T*B, 3H)

    whh = whh_ref[...]                                            # (H, 3H) bf16
    b_hn = bhn_ref[...]                                           # (1, H)  f32

    # ---- Serial recurrence, fully unrolled (T small & static). ----
    h = jnp.zeros((B, H), jnp.float32)
    h_bf = h.astype(jnp.bfloat16)                                 # matmul operand
    for t in range(T):
        gi = gi_all[t * B:(t + 1) * B, :]                         # (B, 3H) static slice
        if t == 0:
            gh = jnp.zeros((B, 3 * H), jnp.float32)               # h0 == 0
        else:
            gh = jnp.dot(h_bf, whh, preferred_element_type=jnp.float32)
        # Lane-aligned gate slices (offsets 0 / 128 / 256).
        r = jax.nn.sigmoid(gi[:, 0:H] + gh[:, 0:H])
        z = jax.nn.sigmoid(gi[:, H:2 * H] + gh[:, H:2 * H])
        n = jnp.tanh(gi[:, 2 * H:3 * H] + r * (gh[:, 2 * H:3 * H] + b_hn))
        h = (1.0 - z) * n + z * h                                 # f32 VPU math
        h_bf = h.astype(jnp.bfloat16)                             # single pack/step

    # ---- Final fc + sigmoid: VPU multiply + cross-lane (XLU) reduce. ----
    logit = jnp.sum(h * fcw_ref[...], axis=-1, keepdims=True) + fcb_ref[0]
    prob = jax.nn.sigmoid(logit)                                  # (B, 1)
    out_ref[...] = jnp.broadcast_to(prob, (B, out_ref.shape[1]))  # lane-dense store


# ------------------------------ JAX wrapper ---------------------------------

def sentiment_forward(tokens, kp):
    """tokens: (B, T) int32 token ids. kp: packed kernel params (pack_params).

    Returns (B, 1) float32 probabilities.
    """
    B, T = tokens.shape
    E = kp["emb"].shape[1]
    Hp = kp["w_hh"].shape[0]

    # Pad batch to a multiple of 8 (f32 sublane width); padded rows use token 0
    # and are sliced off afterwards.
    B_pad = max(8, ((B + 7) // 8) * 8)
    if B_pad != B:
        tokens = jnp.pad(tokens, ((0, B_pad - B), (0, 0)))

    kernel = functools.partial(gru_sentiment_kernel, T=T, B=B_pad, H=Hp)

    out = pl.pallas_call(
        kernel,
        out_shape=jax.ShapeDtypeStruct((B_pad, 128), jnp.float32),
        in_specs=[
            pl.BlockSpec(memory_space=pltpu.MemorySpace.SMEM),   # tokens
            pl.BlockSpec(memory_space=pltpu.MemorySpace.VMEM),   # embedding table
            pl.BlockSpec(memory_space=pltpu.MemorySpace.VMEM),   # w_ih
            pl.BlockSpec(memory_space=pltpu.MemorySpace.VMEM),   # w_hh
            pl.BlockSpec(memory_space=pltpu.MemorySpace.VMEM),   # b_x
            pl.BlockSpec(memory_space=pltpu.MemorySpace.VMEM),   # b_hn
            pl.BlockSpec(memory_space=pltpu.MemorySpace.VMEM),   # fc_w
            pl.BlockSpec(memory_space=pltpu.MemorySpace.SMEM),   # fc_b
        ],
        out_specs=pl.BlockSpec(memory_space=pltpu.MemorySpace.VMEM),
        scratch_shapes=[pltpu.VMEM((T * B_pad, E), jnp.float32)],
    )(tokens, kp["emb"], kp["w_ih"], kp["w_hh"], kp["b_x"], kp["b_hn"],
      kp["fc_w"], kp["fc_b"])
    return out[:B, :1]


# ---------------------- Deterministic parameter init ------------------------

def init_params(key, vocab_size, embed_dim, hidden_dim, pad_idx=0):
    """Logical (unpadded, f32) parameters. Gate order (r, z, n), fused layouts."""
    ks = jax.random.split(key, 7)
    bound = 1.0 / np.sqrt(hidden_dim)

    embedding = jax.random.normal(ks[0], (vocab_size, embed_dim), jnp.float32)
    embedding = embedding.at[pad_idx].set(0.0)        # padding_idx row = 0

    w_ih = jax.random.uniform(ks[1], (embed_dim, 3 * hidden_dim),
                              jnp.float32, -bound, bound)
    w_hh = jax.random.uniform(ks[2], (hidden_dim, 3 * hidden_dim),
                              jnp.float32, -bound, bound)
    b_ih = jax.random.uniform(ks[3], (3 * hidden_dim,), jnp.float32, -bound, bound)
    b_hh = jax.random.uniform(ks[4], (3 * hidden_dim,), jnp.float32, -bound, bound)
    fc_w = jax.random.uniform(ks[5], (hidden_dim,), jnp.float32, -bound, bound)
    fc_b = jax.random.uniform(ks[6], (), jnp.float32, -bound, bound)
    return dict(embedding=embedding, w_ih=w_ih, w_hh=w_hh,
                b_ih=b_ih, b_hh=b_hh, fc_w=fc_w, fc_b=fc_b)


def pack_params(params, lane_pad=128):
    """One-time packing for the kernel: lane-pad gates/hidden to 128, fold the
    r/z hidden biases into the input bias, cast matmul weights to bf16."""
    E, threeH = params["w_ih"].shape
    H = threeH // 3
    Hp = lane_pad
    assert Hp >= H

    def pad_gate_cols(w):                              # (D, 3H) -> (D, 3Hp)
        return jnp.concatenate(
            [jnp.pad(w[:, g * H:(g + 1) * H], ((0, 0), (0, Hp - H)))
             for g in range(3)], axis=1)

    w_ih_p = pad_gate_cols(params["w_ih"]).astype(jnp.bfloat16)          # (E, 3Hp)
    w_hh_p = pad_gate_cols(
        jnp.pad(params["w_hh"], ((0, Hp - H), (0, 0)))).astype(jnp.bfloat16)  # (Hp, 3Hp)

    b_ih, b_hh = params["b_ih"], params["b_hh"]
    # Fold b_ih + b_hh for the r and z gates; keep b_hn separate (PyTorch GRU).
    bx = b_ih + jnp.concatenate([b_hh[:2 * H], jnp.zeros((H,), jnp.float32)])
    bx_p = jnp.concatenate(
        [jnp.pad(bx[g * H:(g + 1) * H], (0, Hp - H)) for g in range(3)]
    ).reshape(1, 3 * Hp)
    bhn_p = jnp.pad(b_hh[2 * H:], (0, Hp - H)).reshape(1, Hp)

    fcw_p = jnp.pad(params["fc_w"], (0, Hp - H)).reshape(1, Hp)
    fcb = params["fc_b"].reshape(1)

    return dict(emb=params["embedding"],            # f32 table, VMEM resident
                w_ih=w_ih_p, w_hh=w_hh_p, b_x=bx_p, b_hn=bhn_p,
                fc_w=fcw_p, fc_b=fcb)


# ------------------------ Pure-JAX reference (check) -------------------------

def reference_forward(tokens, params):
    emb = params["embedding"][tokens]                 # (B, T, E), f32
    B = tokens.shape[0]
    H = params["w_hh"].shape[0]

    def step(h, x_t):
        gi = x_t @ params["w_ih"] + params["b_ih"]    # (B, 3H)
        gh = h @ params["w_hh"] + params["b_hh"]      # (B, 3H)
        r = jax.nn.sigmoid(gi[:, :H] + gh[:, :H])
        z = jax.nn.sigmoid(gi[:, H:2 * H] + gh[:, H:2 * H])
        n = jnp.tanh(gi[:, 2 * H:] + r * gh[:, 2 * H:])
        return (1.0 - z) * n + z * h, None

    h0 = jnp.zeros((B, H), jnp.float32)
    h_T, _ = jax.lax.scan(step, h0, jnp.transpose(emb, (1, 0, 2)))
    return jax.nn.sigmoid(h_T @ params["fc_w"][:, None] + params["fc_b"])


# ----------------------------------- main ------------------------------------

if __name__ == "__main__":
    VOCAB = 1000
    EMBED_DIM = 128
    HIDDEN_DIM = 64
    B, T = 2, 8

    key = jax.random.PRNGKey(0)
    k_param, k_tok = jax.random.split(key)
    params = init_params(k_param, VOCAB, EMBED_DIM, HIDDEN_DIM, pad_idx=0)
    kparams = pack_params(params)                     # one-time pack / bf16 cast

    tokens = jax.random.randint(k_tok, (B, T), 1, VOCAB, dtype=jnp.int32)

    out = jax.block_until_ready(sentiment_forward(tokens, kparams))
    ref = jax.block_until_ready(reference_forward(tokens, params))

    assert out.shape == (B, 1), out.shape
    # bf16 matmul inputs (f32 accumulation) => relaxed tolerance vs f32 ref.
    np.testing.assert_allclose(np.asarray(out), np.asarray(ref),
                               rtol=2e-2, atol=2e-2)
    print("KERNEL_OK")
</pallas_src>

<mosaic_0001>
module attributes {stable_mosaic.version = 11 : i64} {
  func.func @gru_sentiment_kernel(%arg0: memref<8x8xi32, #tpu.memory_space<smem>>, %arg1: memref<1000x128xf32, #tpu.memory_space<vmem>>, %arg2: memref<128x384xbf16, #tpu.memory_space<vmem>>, %arg3: memref<128x384xbf16, #tpu.memory_space<vmem>>, %arg4: memref<1x384xf32, #tpu.memory_space<vmem>>, %arg5: memref<1x128xf32, #tpu.memory_space<vmem>>, %arg6: memref<1x128xf32, #tpu.memory_space<vmem>>, %arg7: memref<1xf32, #tpu.memory_space<smem>>, %arg8: memref<8x128xf32, #tpu.memory_space<vmem>>, %arg9: memref<64x128xf32, #tpu.memory_space<vmem>>) attributes {dimension_semantics = [], scalar_prefetch = 0 : i64, scratch_operands = 1 : i64, tpu.core_type = #tpu.core_type<tc>} {
    %c0 = arith.constant 0 : index
    %c0_0 = arith.constant 0 : index
    %0 = memref.load %arg0[%c0, %c0_0] : memref<8x8xi32, #tpu.memory_space<smem>>
    %1 = arith.index_cast %0 : i32 to index
    %c0_1 = arith.constant 0 : index
    %2 = vector.load %arg1[%1, %c0_1] : memref<1000x128xf32, #tpu.memory_space<vmem>>, vector<1x128xf32>
    %c0_2 = arith.constant 0 : index
    %c0_3 = arith.constant 0 : index
    %3 = vector.load %arg9[%c0_2, %c0_3] : memref<64x128xf32, #tpu.memory_space<vmem>>, vector<1x128xf32>
    tpu.vector_store %arg9[%c0_2, %c0_3], %2 {strides = array<i32>} : memref<64x128xf32, #tpu.memory_space<vmem>>, vector<1x128xf32>,
    %c1 = arith.constant 1 : index
    %c0_4 = arith.constant 0 : index
    %4 = memref.load %arg0[%c1, %c0_4] : memref<8x8xi32, #tpu.memory_space<smem>>
    %5 = arith.index_cast %4 : i32 to index
    %c0_5 = arith.constant 0 : index
    %6 = vector.load %arg1[%5, %c0_5] : memref<1000x128xf32, #tpu.memory_space<vmem>>, vector<1x128xf32>
    %c1_6 = arith.constant 1 : index
    %c0_7 = arith.constant 0 : index
    %7 = vector.load %arg9[%c1_6, %c0_7] : memref<64x128xf32, #tpu.memory_space<vmem>>, vector<1x128xf32>
    tpu.vector_store %arg9[%c1_6, %c0_7], %6 {strides = array<i32>} : memref<64x128xf32, #tpu.memory_space<vmem>>, vector<1x128xf32>,
    %c2 = arith.constant 2 : index
    %c0_8 = arith.constant 0 : index
    %8 = memref.load %arg0[%c2, %c0_8] : memref<8x8xi32, #tpu.memory_space<smem>>
    %9 = arith.index_cast %8 : i32 to index
    %c0_9 = arith.constant 0 : index
    %10 = vector.load %arg1[%9, %c0_9] : memref<1000x128xf32, #tpu.memory_space<vmem>>, vector<1x128xf32>
    %c2_10 = arith.constant 2 : index
    %c0_11 = arith.constant 0 : index
    %11 = vector.load %arg9[%c2_10, %c0_11] : memref<64x128xf32, #tpu.memory_space<vmem>>, vector<1x128xf32>
    tpu.vector_store %arg9[%c2_10, %c0_11], %10 {strides = array<i32>} : memref<64x128xf32, #tpu.memory_space<vmem>>, vector<1x128xf32>,
    %c3 = arith.constant 3 : index
    %c0_12 = arith.constant 0 : index
    %12 = memref.load %arg0[%c3, %c0_12] : memref<8x8xi32, #tpu.memory_space<smem>>
    %13 = arith.index_cast %12 : i32 to index
    %c0_13 = arith.constant 0 : index
    %14 = vector.load %arg1[%13, %c0_13] : memref<1000x128xf32, #tpu.memory_space<vmem>>, vector<1x128xf32>
    %c3_14 = arith.constant 3 : index
    %c0_15 = arith.constant 0 : index
    %15 = vector.load %arg9[%c3_14, %c0_15] : memref<64x128xf32, #tpu.memory_space<vmem>>, vector<1x128xf32>
    tpu.vector_store %arg9[%c3_14, %c0_15], %14 {strides = array<i32>} : memref<64x128xf32, #tpu.memory_space<vmem>>, vector<1x128xf32>,
    %c4 = arith.constant 4 : index
    %c0_16 = arith.constant 0 : index
    %16 = memref.load %arg0[%c4, %c0_16] : memref<8x8xi32, #tpu.memory_space<smem>>
    %17 = arith.index_cast %16 : i32 to index
    %c0_17 = arith.constant 0 : index
    %18 = vector.load %arg1[%17, %c0_17] : memref<1000x128xf32, #tpu.memory_space<vmem>>, vector<1x128xf32>
    %c4_18 = arith.constant 4 : index
    %c0_19 = arith.constant 0 : index
    %19 = vector.load %arg9[%c4_18, %c0_19] : memref<64x128xf32, #tpu.memory_space<vmem>>, vector<1x128xf32>
    tpu.vector_store %arg9[%c4_18, %c0_19], %18 {strides = array<i32>} : memref<64x128xf32, #tpu.memory_space<vmem>>, vector<1x128xf32>,
    %c5 = arith.constant 5 : index
    %c0_20 = arith.constant 0 : index
    %20 = memref.load %arg0[%c5, %c0_20] : memref<8x8xi32, #tpu.memory_space<smem>>
    %21 = arith.index_cast %20 : i32 to index
    %c0_21 = arith.constant 0 : index
    %22 = vector.load %arg1[%21, %c0_21] : memref<1000x128xf32, #tpu.memory_space<vmem>>, vector<1x128xf32>
    %c5_22 = arith.constant 5 : index
    %c0_23 = arith.constant 0 : index
    %23 = vector.load %arg9[%c5_22, %c0_23] : memref<64x128xf32, #tpu.memory_space<vmem>>, vector<1x128xf32>
    tpu.vector_store %arg9[%c5_22, %c0_23], %22 {strides = array<i32>} : memref<64x128xf32, #tpu.memory_space<vmem>>, vector<1x128xf32>,
    %c6 = arith.constant 6 : index
    %c0_24 = arith.constant 0 : index
    %24 = memref.load %arg0[%c6, %c0_24] : memref<8x8xi32, #tpu.memory_space<smem>>
    %25 = arith.index_cast %24 : i32 to index
    %c0_25 = arith.constant 0 : index
    %26 = vector.load %arg1[%25, %c0_25] : memref<1000x128xf32, #tpu.memory_space<vmem>>, vector<1x128xf32>
    %c6_26 = arith.constant 6 : index
    %c0_27 = arith.constant 0 : index
    %27 = vector.load %arg9[%c6_26, %c0_27] : memref<64x128xf32, #tpu.memory_space<vmem>>, vector<1x128xf32>
    tpu.vector_store %arg9[%c6_26, %c0_27], %26 {strides = array<i32>} : memref<64x128xf32, #tpu.memory_space<vmem>>, vector<1x128xf32>,
    %c7 = arith.constant 7 : index
    %c0_28 = arith.constant 0 : index
    %28 = memref.load %arg0[%c7, %c0_28] : memref<8x8xi32, #tpu.memory_space<smem>>
    %29 = arith.index_cast %28 : i32 to index
    %c0_29 = arith.constant 0 : index
    %30 = vector.load %arg1[%29, %c0_29] : memref<1000x128xf32, #tpu.memory_space<vmem>>, vector<1x128xf32>
    %c7_30 = arith.constant 7 : index
    %c0_31 = arith.constant 0 : index
    %31 = vector.load %arg9[%c7_30, %c0_31] : memref<64x128xf32, #tpu.memory_space<vmem>>, vector<1x128xf32>
    tpu.vector_store %arg9[%c7_30, %c0_31], %30 {strides = array<i32>} : memref<64x128xf32, #tpu.memory_space<vmem>>, vector<1x128xf32>,
    %c0_32 = arith.constant 0 : index
    %c1_33 = arith.constant 1 : index
    %32 = memref.load %arg0[%c0_32, %c1_33] : memref<8x8xi32, #tpu.memory_space<smem>>
    %33 = arith.index_cast %32 : i32 to index
    %c0_34 = arith.constant 0 : index
    %34 = vector.load %arg1[%33, %c0_34] : memref<1000x128xf32, #tpu.memory_space<vmem>>, vector<1x128xf32>
    %c8 = arith.constant 8 : index
    %c0_35 = arith.constant 0 : index
    %35 = vector.load %arg9[%c8, %c0_35] : memref<64x128xf32, #tpu.memory_space<vmem>>, vector<1x128xf32>
    tpu.vector_store %arg9[%c8, %c0_35], %34 {strides = array<i32>} : memref<64x128xf32, #tpu.memory_space<vmem>>, vector<1x128xf32>,
    %c1_36 = arith.constant 1 : index
    %c1_37 = arith.constant 1 : index
    %36 = memref.load %arg0[%c1_36, %c1_37] : memref<8x8xi32, #tpu.memory_space<smem>>
    %37 = arith.index_cast %36 : i32 to index
    %c0_38 = arith.constant 0 : index
    %38 = vector.load %arg1[%37, %c0_38] : memref<1000x128xf32, #tpu.memory_space<vmem>>, vector<1x128xf32>
    %c9 = arith.constant 9 : index
    %c0_39 = arith.constant 0 : index
    %39 = vector.load %arg9[%c9, %c0_39] : memref<64x128xf32, #tpu.memory_space<vmem>>, vector<1x128xf32>
    tpu.vector_store %arg9[%c9, %c0_39], %38 {strides = array<i32>} : memref<64x128xf32, #tpu.memory_space<vmem>>, vector<1x128xf32>,
    %c2_40 = arith.constant 2 : index
    %c1_41 = arith.constant 1 : index
    %40 = memref.load %arg0[%c2_40, %c1_41] : memref<8x8xi32, #tpu.memory_space<smem>>
    %41 = arith.index_cast %40 : i32 to index
    %c0_42 = arith.constant 0 : index
    %42 = vector.load %arg1[%41, %c0_42] : memref<1000x128xf32, #tpu.memory_space<vmem>>, vector<1x128xf32>
    %c10 = arith.constant 10 : index
    %c0_43 = arith.constant 0 : index
    %43 = vector.load %arg9[%c10, %c0_43] : memref<64x128xf32, #tpu.memory_space<vmem>>, vector<1x128xf32>
    tpu.vector_store %arg9[%c10, %c0_43], %42 {strides = array<i32>} : memref<64x128xf32, #tpu.memory_space<vmem>>, vector<1x128xf32>,
    %c3_44 = arith.constant 3 : index
    %c1_45 = arith.constant 1 : index
    %44 = memref.load %arg0[%c3_44, %c1_45] : memref<8x8xi32, #tpu.memory_space<smem>>
    %45 = arith.index_cast %44 : i32 to index
    %c0_46 = arith.constant 0 : index
    %46 = vector.load %arg1[%45, %c0_46] : memref<1000x128xf32, #tpu.memory_space<vmem>>, vector<1x128xf32>
    %c11 = arith.constant 11 : index
    %c0_47 = arith.constant 0 : index
    %47 = vector.load %arg9[%c11, %c0_47] : memref<64x128xf32, #tpu.memory_space<vmem>>, vector<1x128xf32>
    tpu.vector_store %arg9[%c11, %c0_47], %46 {strides = array<i32>} : memref<64x128xf32, #tpu.memory_space<vmem>>, vector<1x128xf32>,
    %c4_48 = arith.constant 4 : index
    %c1_49 = arith.constant 1 : index
    %48 = memref.load %arg0[%c4_48, %c1_49] : memref<8x8xi32, #tpu.memory_space<smem>>
    %49 = arith.index_cast %48 : i32 to index
    %c0_50 = arith.constant 0 : index
    %50 = vector.load %arg1[%49, %c0_50] : memref<1000x128xf32, #tpu.memory_space<vmem>>, vector<1x128xf32>
    %c12 = arith.constant 12 : index
    %c0_51 = arith.constant 0 : index
    %51 = vector.load %arg9[%c12, %c0_51] : memref<64x128xf32, #tpu.memory_space<vmem>>, vector<1x128xf32>
    tpu.vector_store %arg9[%c12, %c0_51], %50 {strides = array<i32>} : memref<64x128xf32, #tpu.memory_space<vmem>>, vector<1x128xf32>,
    %c5_52 = arith.constant 5 : index
    %c1_53 = arith.constant 1 : index
    %52 = memref.load %arg0[%c5_52, %c1_53] : memref<8x8xi32, #tpu.memory_space<smem>>
    %53 = arith.index_cast %52 : i32 to index
    %c0_54 = arith.constant 0 : index
    %54 = vector.load %arg1[%53, %c0_54] : memref<1000x128xf32, #tpu.memory_space<vmem>>, vector<1x128xf32>
    %c13 = arith.constant 13 : index
    %c0_55 = arith.constant 0 : index
    %55 = vector.load %arg9[%c13, %c0_55] : memref<64x128xf32, #tpu.memory_space<vmem>>, vector<1x128xf32>
    tpu.vector_store %arg9[%c13, %c0_55], %54 {strides = array<i32>} : memref<64x128xf32, #tpu.memory_space<vmem>>, vector<1x128xf32>,
    %c6_56 = arith.constant 6 : index
    %c1_57 = arith.constant 1 : index
    %56 = memref.load %arg0[%c6_56, %c1_57] : memref<8x8xi32, #tpu.memory_space<smem>>
    %57 = arith.index_cast %56 : i32 to index
    %c0_58 = arith.constant 0 : index
    %58 = vector.load %arg1[%57, %c0_58] : memref<1000x128xf32, #tpu.memory_space<vmem>>, vector<1x128xf32>
    %c14 = arith.constant 14 : index
    %c0_59 = arith.constant 0 : index
    %59 = vector.load %arg9[%c14, %c0_59] : memref<64x128xf32, #tpu.memory_space<vmem>>, vector<1x128xf32>
    tpu.vector_store %arg9[%c14, %c0_59], %58 {strides = array<i32>} : memref<64x128xf32, #tpu.memory_space<vmem>>, vector<1x128xf32>,
    %c7_60 = arith.constant 7 : index
    %c1_61 = arith.constant 1 : index
    %60 = memref.load %arg0[%c7_60, %c1_61] : memref<8x8xi32, #tpu.memory_space<smem>>
    %61 = arith.index_cast %60 : i32 to index
    %c0_62 = arith.constant 0 : index
    %62 = vector.load %arg1[%61, %c0_62] : memref<1000x128xf32, #tpu.memory_space<vmem>>, vector<1x128xf32>
    %c15 = arith.constant 15 : index
    %c0_63 = arith.constant 0 : index
    %63 = vector.load %arg9[%c15, %c0_63] : memref<64x128xf32, #tpu.memory_space<vmem>>, vector<1x128xf32>
    tpu.vector_store %arg9[%c15, %c0_63], %62 {strides = array<i32>} : memref<64x128xf32, #tpu.memory_space<vmem>>, vector<1x128xf32>,
    %c0_64 = arith.constant 0 : index
    %c2_65 = arith.constant 2 : index
    %64 = memref.load %arg0[%c0_64, %c2_65] : memref<8x8xi32, #tpu.memory_space<smem>>
    %65 = arith.index_cast %64 : i32 to index
    %c0_66 = arith.constant 0 : index
    %66 = vector.load %arg1[%65, %c0_66] : memref<1000x128xf32, #tpu.memory_space<vmem>>, vector<1x128xf32>
    %c16 = arith.constant 16 : index
    %c0_67 = arith.constant 0 : index
    %67 = vector.load %arg9[%c16, %c0_67] : memref<64x128xf32, #tpu.memory_space<vmem>>, vector<1x128xf32>
    tpu.vector_store %arg9[%c16, %c0_67], %66 {strides = array<i32>} : memref<64x128xf32, #tpu.memory_space<vmem>>, vector<1x128xf32>,
    %c1_68 = arith.constant 1 : index
    %c2_69 = arith.constant 2 : index
    %68 = memref.load %arg0[%c1_68, %c2_69] : memref<8x8xi32, #tpu.memory_space<smem>>
    %69 = arith.index_cast %68 : i32 to index
    %c0_70 = arith.constant 0 : index
    %70 = vector.load %arg1[%69, %c0_70] : memref<1000x128xf32, #tpu.memory_space<vmem>>, vector<1x128xf32>
    %c17 = arith.constant 17 : index
    %c0_71 = arith.constant 0 : index
    %71 = vector.load %arg9[%c17, %c0_71] : memref<64x128xf32, #tpu.memory_space<vmem>>, vector<1x128xf32>
    tpu.vector_store %arg9[%c17, %c0_71], %70 {strides = array<i32>} : memref<64x128xf32, #tpu.memory_space<vmem>>, vector<1x128xf32>,
    %c2_72 = arith.constant 2 : index
    %c2_73 = arith.constant 2 : index
    %72 = memref.load %arg0[%c2_72, %c2_73] : memref<8x8xi32, #tpu.memory_space<smem>>
    %73 = arith.index_cast %72 : i32 to index
    %c0_74 = arith.constant 0 : index
    %74 = vector.load %arg1[%73, %c0_74] : memref<1000x128xf32, #tpu.memory_space<vmem>>, vector<1x128xf32>
    %c18 = arith.constant 18 : index
    %c0_75 = arith.constant 0 : index
    %75 = vector.load %arg9[%c18, %c0_75] : memref<64x128xf32, #tpu.memory_space<vmem>>, vector<1x128xf32>
    tpu.vector_store %arg9[%c18, %c0_75], %74 {strides = array<i32>} : memref<64x128xf32, #tpu.memory_space<vmem>>, vector<1x128xf32>,
    %c3_76 = arith.constant 3 : index
    %c2_77 = arith.constant 2 : index
    %76 = memref.load %arg0[%c3_76, %c2_77] : memref<8x8xi32, #tpu.memory_space<smem>>
    %77 = arith.index_cast %76 : i32 to index
    %c0_78 = arith.constant 0 : index
    %78 = vector.load %arg1[%77, %c0_78] : memref<1000x128xf32, #tpu.memory_space<vmem>>, vector<1x128xf32>
    %c19 = arith.constant 19 : index
    %c0_79 = arith.constant 0 : index
    %79 = vector.load %arg9[%c19, %c0_79] : memref<64x128xf32, #tpu.memory_space<vmem>>, vector<1x128xf32>
    tpu.vector_store %arg9[%c19, %c0_79], %78 {strides = array<i32>} : memref<64x128xf32, #tpu.memory_space<vmem>>, vector<1x128xf32>,
    %c4_80 = arith.constant 4 : index
    %c2_81 = arith.constant 2 : index
    %80 = memref.load %arg0[%c4_80, %c2_81] : memref<8x8xi32, #tpu.memory_space<smem>>
    %81 = arith.index_cast %80 : i32 to index
    %c0_82 = arith.constant 0 : index
    %82 = vector.load %arg1[%81, %c0_82] : memref<1000x128xf32, #tpu.memory_space<vmem>>, vector<1x128xf32>
    %c20 = arith.constant 20 : index
    %c0_83 = arith.constant 0 : index
    %83 = vector.load %arg9[%c20, %c0_83] : memref<64x128xf32, #tpu.memory_space<vmem>>, vector<1x128xf32>
    tpu.vector_store %arg9[%c20, %c0_83], %82 {strides = array<i32>} : memref<64x128xf32, #tpu.memory_space<vmem>>, vector<1x128xf32>,
    %c5_84 = arith.constant 5 : index
    %c2_85 = arith.constant 2 : index
    %84 = memref.load %arg0[%c5_84, %c2_85] : memref<8x8xi32, #tpu.memory_space<smem>>
    %85 = arith.index_cast %84 : i32 to index
    %c0_86 = arith.constant 0 : index
    %86 = vector.load %arg1[%85, %c0_86] : memref<1000x128xf32, #tpu.memory_space<vmem>>, vector<1x128xf32>
    %c21 = arith.constant 21 : index
    %c0_87 = arith.constant 0 : index
    %87 = vector.load %arg9[%c21, %c0_87] : memref<64x128xf32, #tpu.memory_space<vmem>>, vector<1x128xf32>
    tpu.vector_store %arg9[%c21, %c0_87], %86 {strides = array<i32>} : memref<64x128xf32, #tpu.memory_space<vmem>>, vector<1x128xf32>,
    %c6_88 = arith.constant 6 : index
    %c2_89 = arith.constant 2 : index
    %88 = memref.load %arg0[%c6_88, %c2_89] : memref<8x8xi32, #tpu.memory_space<smem>>
    %89 = arith.index_cast %88 : i32 to index
    %c0_90 = arith.constant 0 : index
    %90 = vector.load %arg1[%89, %c0_90] : memref<1000x128xf32, #tpu.memory_space<vmem>>, vector<1x128xf32>
    %c22 = arith.constant 22 : index
    %c0_91 = arith.constant 0 : index
    %91 = vector.load %arg9[%c22, %c0_91] : memref<64x128xf32, #tpu.memory_space<vmem>>, vector<1x128xf32>
    tpu.vector_store %arg9[%c22, %c0_91], %90 {strides = array<i32>} : memref<64x128xf32, #tpu.memory_space<vmem>>, vector<1x128xf32>,
    %c7_92 = arith.constant 7 : index
    %c2_93 = arith.constant 2 : index
    %92 = memref.load %arg0[%c7_92, %c2_93] : memref<8x8xi32, #tpu.memory_space<smem>>
    %93 = arith.index_cast %92 : i32 to index
    %c0_94 = arith.constant 0 : index
    %94 = vector.load %arg1[%93, %c0_94] : memref<1000x128xf32, #tpu.memory_space<vmem>>, vector<1x128xf32>
    %c23 = arith.constant 23 : index
    %c0_95 = arith.constant 0 : index
    %95 = vector.load %arg9[%c23, %c0_95] : memref<64x128xf32, #tpu.memory_space<vmem>>, vector<1x128xf32>
    tpu.vector_store %arg9[%c23, %c0_95], %94 {strides = array<i32>} : memref<64x128xf32, #tpu.memory_space<vmem>>, vector<1x128xf32>,
    %c0_96 = arith.constant 0 : index
    %c3_97 = arith.constant 3 : index
    %96 = memref.load %arg0[%c0_96, %c3_97] : memref<8x8xi32, #tpu.memory_space<smem>>
    %97 = arith.index_cast %96 : i32 to index
    %c0_98 = arith.constant 0 : index
    %98 = vector.load %arg1[%97, %c0_98] : memref<1000x128xf32, #tpu.memory_space<vmem>>, vector<1x128xf32>
    %c24 = arith.constant 24 : index
    %c0_99 = arith.constant 0 : index
    %99 = vector.load %arg9[%c24, %c0_99] : memref<64x128xf32, #tpu.memory_space<vmem>>, vector<1x128xf32>
    tpu.vector_store %arg9[%c24, %c0_99], %98 {strides = array<i32>} : memref<64x128xf32, #tpu.memory_space<vmem>>, vector<1x128xf32>,
    %c1_100 = arith.constant 1 : index
    %c3_101 = arith.constant 3 : index
    %100 = memref.load %arg0[%c1_100, %c3_101] : memref<8x8xi32, #tpu.memory_space<smem>>
    %101 = arith.index_cast %100 : i32 to index
    %c0_102 = arith.constant 0 : index
    %102 = vector.load %arg1[%101, %c0_102] : memref<1000x128xf32, #tpu.memory_space<vmem>>, vector<1x128xf32>
    %c25 = arith.constant 25 : index
    %c0_103 = arith.constant 0 : index
    %103 = vector.load %arg9[%c25, %c0_103] : memref<64x128xf32, #tpu.memory_space<vmem>>, vector<1x128xf32>
    tpu.vector_store %arg9[%c25, %c0_103], %102 {strides = array<i32>} : memref<64x128xf32, #tpu.memory_space<vmem>>, vector<1x128xf32>,
    %c2_104 = arith.constant 2 : index
    %c3_105 = arith.constant 3 : index
    %104 = memref.load %arg0[%c2_104, %c3_105] : memref<8x8xi32, #tpu.memory_space<smem>>
    %105 = arith.index_cast %104 : i32 to index
    %c0_106 = arith.constant 0 : index
    %106 = vector.load %arg1[%105, %c0_106] : memref<1000x128xf32, #tpu.memory_space<vmem>>, vector<1x128xf32>
    %c26 = arith.constant 26 : index
    %c0_107 = arith.constant 0 : index
    %107 = vector.load %arg9[%c26, %c0_107] : memref<64x128xf32, #tpu.memory_space<vmem>>, vector<1x128xf32>
    tpu.vector_store %arg9[%c26, %c0_107], %106 {strides = array<i32>} : memref<64x128xf32, #tpu.memory_space<vmem>>, vector<1x128xf32>,
    %c3_108 = arith.constant 3 : index
    %c3_109 = arith.constant 3 : index
    %108 = memref.load %arg0[%c3_108, %c3_109] : memref<8x8xi32, #tpu.memory_space<smem>>
    %109 = arith.index_cast %108 : i32 to index
    %c0_110 = arith.constant 0 : index
    %110 = vector.load %arg1[%109, %c0_110] : memref<1000x128xf32, #tpu.memory_space<vmem>>, vector<1x128xf32>
    %c27 = arith.constant 27 : index
    %c0_111 = arith.constant 0 : index
    %111 = vector.load %arg9[%c27, %c0_111] : memref<64x128xf32, #tpu.memory_space<vmem>>, vector<1x128xf32>
    tpu.vector_store %arg9[%c27, %c0_111], %110 {strides = array<i32>} : memref<64x128xf32, #tpu.memory_space<vmem>>, vector<1x128xf32>,
    %c4_112 = arith.constant 4 : index
    %c3_113 = arith.constant 3 : index
    %112 = memref.load %arg0[%c4_112, %c3_113] : memref<8x8xi32, #tpu.memory_space<smem>>
    %113 = arith.index_cast %112 : i32 to index
    %c0_114 = arith.constant 0 : index
    %114 = vector.load %arg1[%113, %c0_114] : memref<1000x128xf32, #tpu.memory_space<vmem>>, vector<1x128xf32>
    %c28 = arith.constant 28 : index
    %c0_115 = arith.constant 0 : index
    %115 = vector.load %arg9[%c28, %c0_115] : memref<64x128xf32, #tpu.memory_space<vmem>>, vector<1x128xf32>
    tpu.vector_store %arg9[%c28, %c0_115], %114 {strides = array<i32>} : memref<64x128xf32, #tpu.memory_space<vmem>>, vector<1x128xf32>,
    %c5_116 = arith.constant 5 : index
    %c3_117 = arith.constant 3 : index
    %116 = memref.load %arg0[%c5_116, %c3_117] : memref<8x8xi32, #tpu.memory_space<smem>>
    %117 = arith.index_cast %116 : i32 to index
    %c0_118 = arith.constant 0 : index
    %118 = vector.load %arg1[%117, %c0_118] : memref<1000x128xf32, #tpu.memory_space<vmem>>, vector<1x128xf32>
    %c29 = arith.constant 29 : index
    %c0_119 = arith.constant 0 : index
    %119 = vector.load %arg9[%c29, %c0_119] : memref<64x128xf32, #tpu.memory_space<vmem>>, vector<1x128xf32>
    tpu.vector_store %arg9[%c29, %c0_119], %118 {strides = array<i32>} : memref<64x128xf32, #tpu.memory_space<vmem>>, vector<1x128xf32>,
    %c6_120 = arith.constant 6 : index
    %c3_121 = arith.constant 3 : index
    %120 = memref.load %arg0[%c6_120, %c3_121] : memref<8x8xi32, #tpu.memory_space<smem>>
    %121 = arith.index_cast %120 : i32 to index
    %c0_122 = arith.constant 0 : index
    %122 = vector.load %arg1[%121, %c0_122] : memref<1000x128xf32, #tpu.memory_space<vmem>>, vector<1x128xf32>
    %c30 = arith.constant 30 : index
    %c0_123 = arith.constant 0 : index
    %123 = vector.load %arg9[%c30, %c0_123] : memref<64x128xf32, #tpu.memory_space<vmem>>, vector<1x128xf32>
    tpu.vector_store %arg9[%c30, %c0_123], %122 {strides = array<i32>} : memref<64x128xf32, #tpu.memory_space<vmem>>, vector<1x128xf32>,
    %c7_124 = arith.constant 7 : index
    %c3_125 = arith.constant 3 : index
    %124 = memref.load %arg0[%c7_124, %c3_125] : memref<8x8xi32, #tpu.memory_space<smem>>
    %125 = arith.index_cast %124 : i32 to index
    %c0_126 = arith.constant 0 : index
    %126 = vector.load %arg1[%125, %c0_126] : memref<1000x128xf32, #tpu.memory_space<vmem>>, vector<1x128xf32>
    %c31 = arith.constant 31 : index
    %c0_127 = arith.constant 0 : index
    %127 = vector.load %arg9[%c31, %c0_127] : memref<64x128xf32, #tpu.memory_space<vmem>>, vector<1x128xf32>
    tpu.vector_store %arg9[%c31, %c0_127], %126 {strides = array<i32>} : memref<64x128xf32, #tpu.memory_space<vmem>>, vector<1x128xf32>,
    %c0_128 = arith.constant 0 : index
    %c4_129 = arith.constant 4 : index
    %128 = memref.load %arg0[%c0_128, %c4_129] : memref<8x8xi32, #tpu.memory_space<smem>>
    %129 = arith.index_cast %128 : i32 to index
    %c0_130 = arith.constant 0 : index
    %130 = vector.load %arg1[%129, %c0_130] : memref<1000x128xf32, #tpu.memory_space<vmem>>, vector<1x128xf32>
    %c32 = arith.constant 32 : index
    %c0_131 = arith.constant 0 : index
    %131 = vector.load %arg9[%c32, %c0_131] : memref<64x128xf32, #tpu.memory_space<vmem>>, vector<1x128xf32>
    tpu.vector_store %arg9[%c32, %c0_131], %130 {strides = array<i32>} : memref<64x128xf32, #tpu.memory_space<vmem>>, vector<1x128xf32>,
    %c1_132 = arith.constant 1 : index
    %c4_133 = arith.constant 4 : index
    %132 = memref.load %arg0[%c1_132, %c4_133] : memref<8x8xi32, #tpu.memory_space<smem>>
    %133 = arith.index_cast %132 : i32 to index
    %c0_134 = arith.constant 0 : index
    %134 = vector.load %arg1[%133, %c0_134] : memref<1000x128xf32, #tpu.memory_space<vmem>>, vector<1x128xf32>
    %c33 = arith.constant 33 : index
    %c0_135 = arith.constant 0 : index
    %135 = vector.load %arg9[%c33, %c0_135] : memref<64x128xf32, #tpu.memory_space<vmem>>, vector<1x128xf32>
    tpu.vector_store %arg9[%c33, %c0_135], %134 {strides = array<i32>} : memref<64x128xf32, #tpu.memory_space<vmem>>, vector<1x128xf32>,
    %c2_136 = arith.constant 2 : index
    %c4_137 = arith.constant 4 : index
    %136 = memref.load %arg0[%c2_136, %c4_137] : memref<8x8xi32, #tpu.memory_space<smem>>
    %137 = arith.index_cast %136 : i32 to index
    %c0_138 = arith.constant 0 : index
    %138 = vector.load %arg1[%137, %c0_138] : memref<1000x128xf32, #tpu.memory_space<vmem>>, vector<1x128xf32>
    %c34 = arith.constant 34 : index
    %c0_139 = arith.constant 0 : index
    %139 = vector.load %arg9[%c34, %c0_139] : memref<64x128xf32, #tpu.memory_space<vmem>>, vector<1x128xf32>
    tpu.vector_store %arg9[%c34, %c0_139], %138 {strides = array<i32>} : memref<64x128xf32, #tpu.memory_space<vmem>>, vector<1x128xf32>,
    %c3_140 = arith.constant 3 : index
    %c4_141 = arith.constant 4 : index
    %140 = memref.load %arg0[%c3_140, %c4_141] : memref<8x8xi32, #tpu.memory_space<smem>>
    %141 = arith.index_cast %140 : i32 to index
    %c0_142 = arith.constant 0 : index
    %142 = vector.load %arg1[%141, %c0_142] : memref<1000x128xf32, #tpu.memory_space<vmem>>, vector<1x128xf32>
    %c35 = arith.constant 35 : index
    %c0_143 = arith.constant 0 : index
    %143 = vector.load %arg9[%c35, %c0_143] : memref<64x128xf32, #tpu.memory_space<vmem>>, vector<1x128xf32>
    tpu.vector_store %arg9[%c35, %c0_143], %142 {strides = array<i32>} : memref<64x128xf32, #tpu.memory_space<vmem>>, vector<1x128xf32>,
    %c4_144 = arith.constant 4 : index
    %c4_145 = arith.constant 4 : index
    %144 = memref.load %arg0[%c4_144, %c4_145] : memref<8x8xi32, #tpu.memory_space<smem>>
    %145 = arith.index_cast %144 : i32 to index
    %c0_146 = arith.constant 0 : index
    %146 = vector.load %arg1[%145, %c0_146] : memref<1000x128xf32, #tpu.memory_space<vmem>>, vector<1x128xf32>
    %c36 = arith.constant 36 : index
    %c0_147 = arith.constant 0 : index
    %147 = vector.load %arg9[%c36, %c0_147] : memref<64x128xf32, #tpu.memory_space<vmem>>, vector<1x128xf32>
    tpu.vector_store %arg9[%c36, %c0_147], %146 {strides = array<i32>} : memref<64x128xf32, #tpu.memory_space<vmem>>, vector<1x128xf32>,
    %c5_148 = arith.constant 5 : index
    %c4_149 = arith.constant 4 : index
    %148 = memref.load %arg0[%c5_148, %c4_149] : memref<8x8xi32, #tpu.memory_space<smem>>
    %149 = arith.index_cast %148 : i32 to index
    %c0_150 = arith.constant 0 : index
    %150 = vector.load %arg1[%149, %c0_150] : memref<1000x128xf32, #tpu.memory_space<vmem>>, vector<1x128xf32>
    %c37 = arith.constant 37 : index
    %c0_151 = arith.constant 0 : index
    %151 = vector.load %arg9[%c37, %c0_151] : memref<64x128xf32, #tpu.memory_space<vmem>>, vector<1x128xf32>
    tpu.vector_store %arg9[%c37, %c0_151], %150 {strides = array<i32>} : memref<64x128xf32, #tpu.memory_space<vmem>>, vector<1x128xf32>,
    %c6_152 = arith.constant 6 : index
    %c4_153 = arith.constant 4 : index
    %152 = memref.load %arg0[%c6_152, %c4_153] : memref<8x8xi32, #tpu.memory_space<smem>>
    %153 = arith.index_cast %152 : i32 to index
    %c0_154 = arith.constant 0 : index
    %154 = vector.load %arg1[%153, %c0_154] : memref<1000x128xf32, #tpu.memory_space<vmem>>, vector<1x128xf32>
    %c38 = arith.constant 38 : index
    %c0_155 = arith.constant 0 : index
    %155 = vector.load %arg9[%c38, %c0_155] : memref<64x128xf32, #tpu.memory_space<vmem>>, vector<1x128xf32>
    tpu.vector_store %arg9[%c38, %c0_155], %154 {strides = array<i32>} : memref<64x128xf32, #tpu.memory_space<vmem>>, vector<1x128xf32>,
    %c7_156 = arith.constant 7 : index
    %c4_157 = arith.constant 4 : index
    %156 = memref.load %arg0[%c7_156, %c4_157] : memref<8x8xi32, #tpu.memory_space<smem>>
    %157 = arith.index_cast %156 : i32 to index
    %c0_158 = arith.constant 0 : index
    %158 = vector.load %arg1[%157, %c0_158] : memref<1000x128xf32, #tpu.memory_space<vmem>>, vector<1x128xf32>
    %c39 = arith.constant 39 : index
    %c0_159 = arith.constant 0 : index
    %159 = vector.load %arg9[%c39, %c0_159] : memref<64x128xf32, #tpu.memory_space<vmem>>, vector<1x128xf32>
    tpu.vector_store %arg9[%c39, %c0_159], %158 {strides = array<i32>} : memref<64x128xf32, #tpu.memory_space<vmem>>, vector<1x128xf32>,
    %c0_160 = arith.constant 0 : index
    %c5_161 = arith.constant 5 : index
    %160 = memref.load %arg0[%c0_160, %c5_161] : memref<8x8xi32, #tpu.memory_space<smem>>
    %161 = arith.index_cast %160 : i32 to index
    %c0_162 = arith.constant 0 : index
    %162 = vector.load %arg1[%161, %c0_162] : memref<1000x128xf32, #tpu.memory_space<vmem>>, vector<1x128xf32>
    %c40 = arith.constant 40 : index
    %c0_163 = arith.constant 0 : index
    %163 = vector.load %arg9[%c40, %c0_163] : memref<64x128xf32, #tpu.memory_space<vmem>>, vector<1x128xf32>
    tpu.vector_store %arg9[%c40, %c0_163], %162 {strides = array<i32>} : memref<64x128xf32, #tpu.memory_space<vmem>>, vector<1x128xf32>,
    %c1_164 = arith.constant 1 : index
    %c5_165 = arith.constant 5 : index
    %164 = memref.load %arg0[%c1_164, %c5_165] : memref<8x8xi32, #tpu.memory_space<smem>>
    %165 = arith.index_cast %164 : i32 to index
    %c0_166 = arith.constant 0 : index
    %166 = vector.load %arg1[%165, %c0_166] : memref<1000x128xf32, #tpu.memory_space<vmem>>, vector<1x128xf32>
    %c41 = arith.constant 41 : index
    %c0_167 = arith.constant 0 : index
    %167 = vector.load %arg9[%c41, %c0_167] : memref<64x128xf32, #tpu.memory_space<vmem>>, vector<1x128xf32>
    tpu.vector_store %arg9[%c41, %c0_167], %166 {strides = array<i32>} : memref<64x128xf32, #tpu.memory_space<vmem>>, vector<1x128xf32>,
    %c2_168 = arith.constant 2 : index
    %c5_169 = arith.constant 5 : index
    %168 = memref.load %arg0[%c2_168, %c5_169] : memref<8x8xi32, #tpu.memory_space<smem>>
    %169 = arith.index_cast %168 : i32 to index
    %c0_170 = arith.constant 0 : index
    %170 = vector.load %arg1[%169, %c0_170] : memref<1000x128xf32, #tpu.memory_space<vmem>>, vector<1x128xf32>
    %c42 = arith.constant 42 : index
    %c0_171 = arith.constant 0 : index
    %171 = vector.load %arg9[%c42, %c0_171] : memref<64x128xf32, #tpu.memory_space<vmem>>, vector<1x128xf32>
    tpu.vector_store %arg9[%c42, %c0_171], %170 {strides = array<i32>} : memref<64x128xf32, #tpu.memory_space<vmem>>, vector<1x128xf32>,
    %c3_172 = arith.constant 3 : index
    %c5_173 = arith.constant 5 : index
    %172 = memref.load %arg0[%c3_172, %c5_173] : memref<8x8xi32, #tpu.memory_space<smem>>
    %173 = arith.index_cast %172 : i32 to index
    %c0_174 = arith.constant 0 : index
    %174 = vector.load %arg1[%173, %c0_174] : memref<1000x128xf32, #tpu.memory_space<vmem>>, vector<1x128xf32>
    %c43 = arith.constant 43 : index
    %c0_175 = arith.constant 0 : index
    %175 = vector.load %arg9[%c43, %c0_175] : memref<64x128xf32, #tpu.memory_space<vmem>>, vector<1x128xf32>
    tpu.vector_store %arg9[%c43, %c0_175], %174 {strides = array<i32>} : memref<64x128xf32, #tpu.memory_space<vmem>>, vector<1x128xf32>,
    %c4_176 = arith.constant 4 : index
    %c5_177 = arith.constant 5 : index
    %176 = memref.load %arg0[%c4_176, %c5_177] : memref<8x8xi32, #tpu.memory_space<smem>>
    %177 = arith.index_cast %176 : i32 to index
    %c0_178 = arith.constant 0 : index
    %178 = vector.load %arg1[%177, %c0_178] : memref<1000x128xf32, #tpu.memory_space<vmem>>, vector<1x128xf32>
    %c44 = arith.constant 44 : index
    %c0_179 = arith.constant 0 : index
    %179 = vector.load %arg9[%c44, %c0_179] : memref<64x128xf32, #tpu.memory_space<vmem>>, vector<1x128xf32>
    tpu.vector_store %arg9[%c44, %c0_179], %178 {strides = array<i32>} : memref<64x128xf32, #tpu.memory_space<vmem>>, vector<1x128xf32>,
    %c5_180 = arith.constant 5 : index
    %c5_181 = arith.constant 5 : index
    %180 = memref.load %arg0[%c5_180, %c5_181] : memref<8x8xi32, #tpu.memory_space<smem>>
    %181 = arith.index_cast %180 : i32 to index
    %c0_182 = arith.constant 0 : index
    %182 = vector.load %arg1[%181, %c0_182] : memref<1000x128xf32, #tpu.memory_space<vmem>>, vector<1x128xf32>
    %c45 = arith.constant 45 : index
    %c0_183 = arith.constant 0 : index
    %183 = vector.load %arg9[%c45, %c0_183] : memref<64x128xf32, #tpu.memory_space<vmem>>, vector<1x128xf32>
    tpu.vector_store %arg9[%c45, %c0_183], %182 {strides = array<i32>} : memref<64x128xf32, #tpu.memory_space<vmem>>, vector<1x128xf32>,
    %c6_184 = arith.constant 6 : index
    %c5_185 = arith.constant 5 : index
    %184 = memref.load %arg0[%c6_184, %c5_185] : memref<8x8xi32, #tpu.memory_space<smem>>
    %185 = arith.index_cast %184 : i32 to index
    %c0_186 = arith.constant 0 : index
    %186 = vector.load %arg1[%185, %c0_186] : memref<1000x128xf32, #tpu.memory_space<vmem>>, vector<1x128xf32>
    %c46 = arith.constant 46 : index
    %c0_187 = arith.constant 0 : index
    %187 = vector.load %arg9[%c46, %c0_187] : memref<64x128xf32, #tpu.memory_space<vmem>>, vector<1x128xf32>
    tpu.vector_store %arg9[%c46, %c0_187], %186 {strides = array<i32>} : memref<64x128xf32, #tpu.memory_space<vmem>>, vector<1x128xf32>,
    %c7_188 = arith.constant 7 : index
    %c5_189 = arith.constant 5 : index
    %188 = memref.load %arg0[%c7_188, %c5_189] : memref<8x8xi32, #tpu.memory_space<smem>>
    %189 = arith.index_cast %188 : i32 to index
    %c0_190 = arith.constant 0 : index
    %190 = vector.load %arg1[%189, %c0_190] : memref<1000x128xf32, #tpu.memory_space<vmem>>, vector<1x128xf32>
    %c47 = arith.constant 47 : index
    %c0_191 = arith.constant 0 : index
    %191 = vector.load %arg9[%c47, %c0_191] : memref<64x128xf32, #tpu.memory_space<vmem>>, vector<1x128xf32>
    tpu.vector_store %arg9[%c47, %c0_191], %190 {strides = array<i32>} : memref<64x128xf32, #tpu.memory_space<vmem>>, vector<1x128xf32>,
    %c0_192 = arith.constant 0 : index
    %c6_193 = arith.constant 6 : index
    %192 = memref.load %arg0[%c0_192, %c6_193] : memref<8x8xi32, #tpu.memory_space<smem>>
    %193 = arith.index_cast %192 : i32 to index
    %c0_194 = arith.constant 0 : index
    %194 = vector.load %arg1[%193, %c0_194] : memref<1000x128xf32, #tpu.memory_space<vmem>>, vector<1x128xf32>
    %c48 = arith.constant 48 : index
    %c0_195 = arith.constant 0 : index
    %195 = vector.load %arg9[%c48, %c0_195] : memref<64x128xf32, #tpu.memory_space<vmem>>, vector<1x128xf32>
    tpu.vector_store %arg9[%c48, %c0_195], %194 {strides = array<i32>} : memref<64x128xf32, #tpu.memory_space<vmem>>, vector<1x128xf32>,
    %c1_196 = arith.constant 1 : index
    %c6_197 = arith.constant 6 : index
    %196 = memref.load %arg0[%c1_196, %c6_197] : memref<8x8xi32, #tpu.memory_space<smem>>
    %197 = arith.index_cast %196 : i32 to index
    %c0_198 = arith.constant 0 : index
    %198 = vector.load %arg1[%197, %c0_198] : memref<1000x128xf32, #tpu.memory_space<vmem>>, vector<1x128xf32>
    %c49 = arith.constant 49 : index
    %c0_199 = arith.constant 0 : index
    %199 = vector.load %arg9[%c49, %c0_199] : memref<64x128xf32, #tpu.memory_space<vmem>>, vector<1x128xf32>
    tpu.vector_store %arg9[%c49, %c0_199], %198 {strides = array<i32>} : memref<64x128xf32, #tpu.memory_space<vmem>>, vector<1x128xf32>,
    %c2_200 = arith.constant 2 : index
    %c6_201 = arith.constant 6 : index
    %200 = memref.load %arg0[%c2_200, %c6_201] : memref<8x8xi32, #tpu.memory_space<smem>>
    %201 = arith.index_cast %200 : i32 to index
    %c0_202 = arith.constant 0 : index
    %202 = vector.load %arg1[%201, %c0_202] : memref<1000x128xf32, #tpu.memory_space<vmem>>, vector<1x128xf32>
    %c50 = arith.constant 50 : index
    %c0_203 = arith.constant 0 : index
    %203 = vector.load %arg9[%c50, %c0_203] : memref<64x128xf32, #tpu.memory_space<vmem>>, vector<1x128xf32>
    tpu.vector_store %arg9[%c50, %c0_203], %202 {strides = array<i32>} : memref<64x128xf32, #tpu.memory_space<vmem>>, vector<1x128xf32>,
    %c3_204 = arith.constant 3 : index
    %c6_205 = arith.constant 6 : index
    %204 = memref.load %arg0[%c3_204, %c6_205] : memref<8x8xi32, #tpu.memory_space<smem>>
    %205 = arith.index_cast %204 : i32 to index
    %c0_206 = arith.constant 0 : index
    %206 = vector.load %arg1[%205, %c0_206] : memref<1000x128xf32, #tpu.memory_space<vmem>>, vector<1x128xf32>
    %c51 = arith.constant 51 : index
    %c0_207 = arith.constant 0 : index
    %207 = vector.load %arg9[%c51, %c0_207] : memref<64x128xf32, #tpu.memory_space<vmem>>, vector<1x128xf32>
    tpu.vector_store %arg9[%c51, %c0_207], %206 {strides = array<i32>} : memref<64x128xf32, #tpu.memory_space<vmem>>, vector<1x128xf32>,
    %c4_208 = arith.constant 4 : index
    %c6_209 = arith.constant 6 : index
    %208 = memref.load %arg0[%c4_208, %c6_209] : memref<8x8xi32, #tpu.memory_space<smem>>
    %209 = arith.index_cast %208 : i32 to index
    %c0_210 = arith.constant 0 : index
    %210 = vector.load %arg1[%209, %c0_210] : memref<1000x128xf32, #tpu.memory_space<vmem>>, vector<1x128xf32>
    %c52 = arith.constant 52 : index
    %c0_211 = arith.constant 0 : index
    %211 = vector.load %arg9[%c52, %c0_211] : memref<64x128xf32, #tpu.memory_space<vmem>>, vector<1x128xf32>
    tpu.vector_store %arg9[%c52, %c0_211], %210 {strides = array<i32>} : memref<64x128xf32, #tpu.memory_space<vmem>>, vector<1x128xf32>,
    %c5_212 = arith.constant 5 : index
    %c6_213 = arith.constant 6 : index
    %212 = memref.load %arg0[%c5_212, %c6_213] : memref<8x8xi32, #tpu.memory_space<smem>>
    %213 = arith.index_cast %212 : i32 to index
    %c0_214 = arith.constant 0 : index
    %214 = vector.load %arg1[%213, %c0_214] : memref<1000x128xf32, #tpu.memory_space<vmem>>, vector<1x128xf32>
    %c53 = arith.constant 53 : index
    %c0_215 = arith.constant 0 : index
    %215 = vector.load %arg9[%c53, %c0_215] : memref<64x128xf32, #tpu.memory_space<vmem>>, vector<1x128xf32>
    tpu.vector_store %arg9[%c53, %c0_215], %214 {strides = array<i32>} : memref<64x128xf32, #tpu.memory_space<vmem>>, vector<1x128xf32>,
    %c6_216 = arith.constant 6 : index
    %c6_217 = arith.constant 6 : index
    %216 = memref.load %arg0[%c6_216, %c6_217] : memref<8x8xi32, #tpu.memory_space<smem>>
    %217 = arith.index_cast %216 : i32 to index
    %c0_218 = arith.constant 0 : index
    %218 = vector.load %arg1[%217, %c0_218] : memref<1000x128xf32, #tpu.memory_space<vmem>>, vector<1x128xf32>
    %c54 = arith.constant 54 : index
    %c0_219 = arith.constant 0 : index
    %219 = vector.load %arg9[%c54, %c0_219] : memref<64x128xf32, #tpu.memory_space<vmem>>, vector<1x128xf32>
    tpu.vector_store %arg9[%c54, %c0_219], %218 {strides = array<i32>} : memref<64x128xf32, #tpu.memory_space<vmem>>, vector<1x128xf32>,
    %c7_220 = arith.constant 7 : index
    %c6_221 = arith.constant 6 : index
    %220 = memref.load %arg0[%c7_220, %c6_221] : memref<8x8xi32, #tpu.memory_space<smem>>
    %221 = arith.index_cast %220 : i32 to index
    %c0_222 = arith.constant 0 : index
    %222 = vector.load %arg1[%221, %c0_222] : memref<1000x128xf32, #tpu.memory_space<vmem>>, vector<1x128xf32>
    %c55 = arith.constant 55 : index
    %c0_223 = arith.constant 0 : index
    %223 = vector.load %arg9[%c55, %c0_223] : memref<64x128xf32, #tpu.memory_space<vmem>>, vector<1x128xf32>
    tpu.vector_store %arg9[%c55, %c0_223], %222 {strides = array<i32>} : memref<64x128xf32, #tpu.memory_space<vmem>>, vector<1x128xf32>,
    %c0_224 = arith.constant 0 : index
    %c7_225 = arith.constant 7 : index
    %224 = memref.load %arg0[%c0_224, %c7_225] : memref<8x8xi32, #tpu.memory_space<smem>>
    %225 = arith.index_cast %224 : i32 to index
    %c0_226 = arith.constant 0 : index
    %226 = vector.load %arg1[%225, %c0_226] : memref<1000x128xf32, #tpu.memory_space<vmem>>, vector<1x128xf32>
    %c56 = arith.constant 56 : index
    %c0_227 = arith.constant 0 : index
    %227 = vector.load %arg9[%c56, %c0_227] : memref<64x128xf32, #tpu.memory_space<vmem>>, vector<1x128xf32>
    tpu.vector_store %arg9[%c56, %c0_227], %226 {strides = array<i32>} : memref<64x128xf32, #tpu.memory_space<vmem>>, vector<1x128xf32>,
    %c1_228 = arith.constant 1 : index
    %c7_229 = arith.constant 7 : index
    %228 = memref.load %arg0[%c1_228, %c7_229] : memref<8x8xi32, #tpu.memory_space<smem>>
    %229 = arith.index_cast %228 : i32 to index
    %c0_230 = arith.constant 0 : index
    %230 = vector.load %arg1[%229, %c0_230] : memref<1000x128xf32, #tpu.memory_space<vmem>>, vector<1x128xf32>
    %c57 = arith.constant 57 : index
    %c0_231 = arith.constant 0 : index
    %231 = vector.load %arg9[%c57, %c0_231] : memref<64x128xf32, #tpu.memory_space<vmem>>, vector<1x128xf32>
    tpu.vector_store %arg9[%c57, %c0_231], %230 {strides = array<i32>} : memref<64x128xf32, #tpu.memory_space<vmem>>, vector<1x128xf32>,
    %c2_232 = arith.constant 2 : index
    %c7_233 = arith.constant 7 : index
    %232 = memref.load %arg0[%c2_232, %c7_233] : memref<8x8xi32, #tpu.memory_space<smem>>
    %233 = arith.index_cast %232 : i32 to index
    %c0_234 = arith.constant 0 : index
    %234 = vector.load %arg1[%233, %c0_234] : memref<1000x128xf32, #tpu.memory_space<vmem>>, vector<1x128xf32>
    %c58 = arith.constant 58 : index
    %c0_235 = arith.constant 0 : index
    %235 = vector.load %arg9[%c58, %c0_235] : memref<64x128xf32, #tpu.memory_space<vmem>>, vector<1x128xf32>
    tpu.vector_store %arg9[%c58, %c0_235], %234 {strides = array<i32>} : memref<64x128xf32, #tpu.memory_space<vmem>>, vector<1x128xf32>,
    %c3_236 = arith.constant 3 : index
    %c7_237 = arith.constant 7 : index
    %236 = memref.load %arg0[%c3_236, %c7_237] : memref<8x8xi32, #tpu.memory_space<smem>>
    %237 = arith.index_cast %236 : i32 to index
    %c0_238 = arith.constant 0 : index
    %238 = vector.load %arg1[%237, %c0_238] : memref<1000x128xf32, #tpu.memory_space<vmem>>, vector<1x128xf32>
    %c59 = arith.constant 59 : index
    %c0_239 = arith.constant 0 : index
    %239 = vector.load %arg9[%c59, %c0_239] : memref<64x128xf32, #tpu.memory_space<vmem>>, vector<1x128xf32>
    tpu.vector_store %arg9[%c59, %c0_239], %238 {strides = array<i32>} : memref<64x128xf32, #tpu.memory_space<vmem>>, vector<1x128xf32>,
    %c4_240 = arith.constant 4 : index
    %c7_241 = arith.constant 7 : index
    %240 = memref.load %arg0[%c4_240, %c7_241] : memref<8x8xi32, #tpu.memory_space<smem>>
    %241 = arith.index_cast %240 : i32 to index
    %c0_242 = arith.constant 0 : index
    %242 = vector.load %arg1[%241, %c0_242] : memref<1000x128xf32, #tpu.memory_space<vmem>>, vector<1x128xf32>
    %c60 = arith.constant 60 : index
    %c0_243 = arith.constant 0 : index
    %243 = vector.load %arg9[%c60, %c0_243] : memref<64x128xf32, #tpu.memory_space<vmem>>, vector<1x128xf32>
    tpu.vector_store %arg9[%c60, %c0_243], %242 {strides = array<i32>} : memref<64x128xf32, #tpu.memory_space<vmem>>, vector<1x128xf32>,
    %c5_244 = arith.constant 5 : index
    %c7_245 = arith.constant 7 : index
    %244 = memref.load %arg0[%c5_244, %c7_245] : memref<8x8xi32, #tpu.memory_space<smem>>
    %245 = arith.index_cast %244 : i32 to index
    %c0_246 = arith.constant 0 : index
    %246 = vector.load %arg1[%245, %c0_246] : memref<1000x128xf32, #tpu.memory_space<vmem>>, vector<1x128xf32>
    %c61 = arith.constant 61 : index
    %c0_247 = arith.constant 0 : index
    %247 = vector.load %arg9[%c61, %c0_247] : memref<64x128xf32, #tpu.memory_space<vmem>>, vector<1x128xf32>
    tpu.vector_store %arg9[%c61, %c0_247], %246 {strides = array<i32>} : memref<64x128xf32, #tpu.memory_space<vmem>>, vector<1x128xf32>,
    %c6_248 = arith.constant 6 : index
    %c7_249 = arith.constant 7 : index
    %248 = memref.load %arg0[%c6_248, %c7_249] : memref<8x8xi32, #tpu.memory_space<smem>>
    %249 = arith.index_cast %248 : i32 to index
    %c0_250 = arith.constant 0 : index
    %250 = vector.load %arg1[%249, %c0_250] : memref<1000x128xf32, #tpu.memory_space<vmem>>, vector<1x128xf32>
    %c62 = arith.constant 62 : index
    %c0_251 = arith.constant 0 : index
    %251 = vector.load %arg9[%c62, %c0_251] : memref<64x128xf32, #tpu.memory_space<vmem>>, vector<1x128xf32>
    tpu.vector_store %arg9[%c62, %c0_251], %250 {strides = array<i32>} : memref<64x128xf32, #tpu.memory_space<vmem>>, vector<1x128xf32>,
    %c7_252 = arith.constant 7 : index
    %c7_253 = arith.constant 7 : index
    %252 = memref.load %arg0[%c7_252, %c7_253] : memref<8x8xi32, #tpu.memory_space<smem>>
    %253 = arith.index_cast %252 : i32 to index
    %c0_254 = arith.constant 0 : index
    %254 = vector.load %arg1[%253, %c0_254] : memref<1000x128xf32, #tpu.memory_space<vmem>>, vector<1x128xf32>
    %c63 = arith.constant 63 : index
    %c0_255 = arith.constant 0 : index
    %255 = vector.load %arg9[%c63, %c0_255] : memref<64x128xf32, #tpu.memory_space<vmem>>, vector<1x128xf32>
    tpu.vector_store %arg9[%c63, %c0_255], %254 {strides = array<i32>} : memref<64x128xf32, #tpu.memory_space<vmem>>, vector<1x128xf32>,
    %c0_256 = arith.constant 0 : index
    %c0_257 = arith.constant 0 : index
    %256 = vector.load %arg9[%c0_256, %c0_257] : memref<64x128xf32, #tpu.memory_space<vmem>>, vector<64x128xf32>
    %257 = arith.truncf %256 : vector<64x128xf32> to vector<64x128xbf16>
    %c0_258 = arith.constant 0 : index
    %c0_259 = arith.constant 0 : index
    %258 = vector.load %arg2[%c0_258, %c0_259] : memref<128x384xbf16, #tpu.memory_space<vmem>>, vector<128x384xbf16>
    %cst = arith.constant dense<0.000000e+00> : vector<64x384xf32>
    %259 = tpu.matmul %257, %258, %cst {dimension_numbers = #tpu.dot_dimension_numbers<[1], [0], [0], [1], [0, 0, 1, 1], [], []>} : vector<64x128xbf16>, vector<128x384xbf16>, vector<64x384xf32> -> vector<64x384xf32>
    %c0_260 = arith.constant 0 : index
    %c0_261 = arith.constant 0 : index
    %260 = vector.load %arg4[%c0_260, %c0_261] : memref<1x384xf32, #tpu.memory_space<vmem>>, vector<1x384xf32>
    %261 = vector.broadcast %260 : vector<1x384xf32> to vector<64x384xf32>
    %262 = arith.addf %259, %261 : vector<64x384xf32>
    %c0_262 = arith.constant 0 : index
    %c0_263 = arith.constant 0 : index
    %263 = vector.load %arg3[%c0_262, %c0_263] : memref<128x384xbf16, #tpu.memory_space<vmem>>, vector<128x384xbf16>
    %c0_264 = arith.constant 0 : index
    %c0_265 = arith.constant 0 : index
    %264 = vector.load %arg5[%c0_264, %c0_265] : memref<1x128xf32, #tpu.memory_space<vmem>>, vector<1x128xf32>
    %cst_266 = arith.constant 0.000000e+00 : f32
    %265 = vector.broadcast %cst_266 : f32 to vector<8x128xf32>
    %266 = vector.extract_strided_slice %262 {offsets = [0, 0], sizes = [8, 384], strides = [1, 1]} : vector<64x384xf32> to vector<8x384xf32>
    %cst_267 = arith.constant 0.000000e+00 : f32
    %267 = vector.broadcast %cst_267 : f32 to vector<8x384xf32>
    %268 = vector.extract_strided_slice %266 {offsets = [0, 0], sizes = [8, 128], strides = [1, 1]} : vector<8x384xf32> to vector<8x128xf32>
    %269 = vector.extract_strided_slice %267 {offsets = [0, 0], sizes = [8, 128], strides = [1, 1]} : vector<8x384xf32> to vector<8x128xf32>
    %270 = arith.addf %268, %269 : vector<8x128xf32>
    %271 = arith.negf %270 : vector<8x128xf32>
    %272 = math.exp %271 : vector<8x128xf32>
    %cst_268 = arith.constant 1.000000e+00 : f32
    %273 = vector.broadcast %cst_268 : f32 to vector<8x128xf32>
    %274 = arith.addf %273, %272 : vector<8x128xf32>
    %275 = arith.divf %273, %274 : vector<8x128xf32>
    %276 = vector.extract_strided_slice %266 {offsets = [0, 128], sizes = [8, 128], strides = [1, 1]} : vector<8x384xf32> to vector<8x128xf32>
    %277 = vector.extract_strided_slice %267 {offsets = [0, 128], sizes = [8, 128], strides = [1, 1]} : vector<8x384xf32> to vector<8x128xf32>
    %278 = arith.addf %276, %277 : vector<8x128xf32>
    %279 = arith.negf %278 : vector<8x128xf32>
    %280 = math.exp %279 : vector<8x128xf32>
    %cst_269 = arith.constant 1.000000e+00 : f32
    %281 = vector.broadcast %cst_269 : f32 to vector<8x128xf32>
    %282 = arith.addf %281, %280 : vector<8x128xf32>
    %283 = arith.divf %281, %282 : vector<8x128xf32>
    %284 = vector.extract_strided_slice %266 {offsets = [0, 256], sizes = [8, 128], strides = [1, 1]} : vector<8x384xf32> to vector<8x128xf32>
    %285 = vector.extract_strided_slice %267 {offsets = [0, 256], sizes = [8, 128], strides = [1, 1]} : vector<8x384xf32> to vector<8x128xf32>
    %286 = vector.broadcast %264 : vector<1x128xf32> to vector<8x128xf32>
    %287 = arith.addf %285, %286 : vector<8x128xf32>
    %288 = arith.mulf %275, %287 : vector<8x128xf32>
    %289 = arith.addf %284, %288 : vector<8x128xf32>
    %290 = math.tanh %289 : vector<8x128xf32>
    %cst_270 = arith.constant 1.000000e+00 : f32
    %291 = vector.broadcast %cst_270 : f32 to vector<8x128xf32>
    %292 = arith.subf %291, %283 : vector<8x128xf32>
    %293 = arith.mulf %292, %290 : vector<8x128xf32>
    %294 = arith.mulf %283, %265 : vector<8x128xf32>
    %295 = arith.addf %293, %294 : vector<8x128xf32>
    %296 = arith.truncf %295 : vector<8x128xf32> to vector<8x128xbf16>
    %297 = vector.extract_strided_slice %262 {offsets = [8, 0], sizes = [8, 384], strides = [1, 1]} : vector<64x384xf32> to vector<8x384xf32>
    %cst_271 = arith.constant dense<0.000000e+00> : vector<8x384xf32>
    %298 = tpu.matmul %296, %263, %cst_271 {dimension_numbers = #tpu.dot_dimension_numbers<[1], [0], [0], [1], [0, 0, 1, 1], [], []>} : vector<8x128xbf16>, vector<128x384xbf16>, vector<8x384xf32> -> vector<8x384xf32>
    %299 = vector.extract_strided_slice %297 {offsets = [0, 0], sizes = [8, 128], strides = [1, 1]} : vector<8x384xf32> to vector<8x128xf32>
    %300 = vector.extract_strided_slice %298 {offsets = [0, 0], sizes = [8, 128], strides = [1, 1]} : vector<8x384xf32> to vector<8x128xf32>
    %301 = arith.addf %299, %300 : vector<8x128xf32>
    %302 = arith.negf %301 : vector<8x128xf32>
    %303 = math.exp %302 : vector<8x128xf32>
    %cst_272 = arith.constant 1.000000e+00 : f32
    %304 = vector.broadcast %cst_272 : f32 to vector<8x128xf32>
    %305 = arith.addf %304, %303 : vector<8x128xf32>
    %306 = arith.divf %304, %305 : vector<8x128xf32>
    %307 = vector.extract_strided_slice %297 {offsets = [0, 128], sizes = [8, 128], strides = [1, 1]} : vector<8x384xf32> to vector<8x128xf32>
    %308 = vector.extract_strided_slice %298 {offsets = [0, 128], sizes = [8, 128], strides = [1, 1]} : vector<8x384xf32> to vector<8x128xf32>
    %309 = arith.addf %307, %308 : vector<8x128xf32>
    %310 = arith.negf %309 : vector<8x128xf32>
    %311 = math.exp %310 : vector<8x128xf32>
    %cst_273 = arith.constant 1.000000e+00 : f32
    %312 = vector.broadcast %cst_273 : f32 to vector<8x128xf32>
    %313 = arith.addf %312, %311 : vector<8x128xf32>
    %314 = arith.divf %312, %313 : vector<8x128xf32>
    %315 = vector.extract_strided_slice %297 {offsets = [0, 256], sizes = [8, 128], strides = [1, 1]} : vector<8x384xf32> to vector<8x128xf32>
    %316 = vector.extract_strided_slice %298 {offsets = [0, 256], sizes = [8, 128], strides = [1, 1]} : vector<8x384xf32> to vector<8x128xf32>
    %317 = vector.broadcast %264 : vector<1x128xf32> to vector<8x128xf32>
    %318 = arith.addf %316, %317 : vector<8x128xf32>
    %319 = arith.mulf %306, %318 : vector<8x128xf32>
    %320 = arith.addf %315, %319 : vector<8x128xf32>
    %321 = math.tanh %320 : vector<8x128xf32>
    %cst_274 = arith.constant 1.000000e+00 : f32
    %322 = vector.broadcast %cst_274 : f32 to vector<8x128xf32>
    %323 = arith.subf %322, %314 : vector<8x128xf32>
    %324 = arith.mulf %323, %321 : vector<8x128xf32>
    %325 = arith.mulf %314, %295 : vector<8x128xf32>
    %326 = arith.addf %324, %325 : vector<8x128xf32>
    %327 = arith.truncf %326 : vector<8x128xf32> to vector<8x128xbf16>
    %328 = vector.extract_strided_slice %262 {offsets = [16, 0], sizes = [8, 384], strides = [1, 1]} : vector<64x384xf32> to vector<8x384xf32>
    %cst_275 = arith.constant dense<0.000000e+00> : vector<8x384xf32>
    %329 = tpu.matmul %327, %263, %cst_275 {dimension_numbers = #tpu.dot_dimension_numbers<[1], [0], [0], [1], [0, 0, 1, 1], [], []>} : vector<8x128xbf16>, vector<128x384xbf16>, vector<8x384xf32> -> vector<8x384xf32>
    %330 = vector.extract_strided_slice %328 {offsets = [0, 0], sizes = [8, 128], strides = [1, 1]} : vector<8x384xf32> to vector<8x128xf32>
    %331 = vector.extract_strided_slice %329 {offsets = [0, 0], sizes = [8, 128], strides = [1, 1]} : vector<8x384xf32> to vector<8x128xf32>
    %332 = arith.addf %330, %331 : vector<8x128xf32>
    %333 = arith.negf %332 : vector<8x128xf32>
    %334 = math.exp %333 : vector<8x128xf32>
    %cst_276 = arith.constant 1.000000e+00 : f32
    %335 = vector.broadcast %cst_276 : f32 to vector<8x128xf32>
    %336 = arith.addf %335, %334 : vector<8x128xf32>
    %337 = arith.divf %335, %336 : vector<8x128xf32>
    %338 = vector.extract_strided_slice %328 {offsets = [0, 128], sizes = [8, 128], strides = [1, 1]} : vector<8x384xf32> to vector<8x128xf32>
    %339 = vector.extract_strided_slice %329 {offsets = [0, 128], sizes = [8, 128], strides = [1, 1]} : vector<8x384xf32> to vector<8x128xf32>
    %340 = arith.addf %338, %339 : vector<8x128xf32>
    %341 = arith.negf %340 : vector<8x128xf32>
    %342 = math.exp %341 : vector<8x128xf32>
    %cst_277 = arith.constant 1.000000e+00 : f32
    %343 = vector.broadcast %cst_277 : f32 to vector<8x128xf32>
    %344 = arith.addf %343, %342 : vector<8x128xf32>
    %345 = arith.divf %343, %344 : vector<8x128xf32>
    %346 = vector.extract_strided_slice %328 {offsets = [0, 256], sizes = [8, 128], strides = [1, 1]} : vector<8x384xf32> to vector<8x128xf32>
    %347 = vector.extract_strided_slice %329 {offsets = [0, 256], sizes = [8, 128], strides = [1, 1]} : vector<8x384xf32> to vector<8x128xf32>
    %348 = vector.broadcast %264 : vector<1x128xf32> to vector<8x128xf32>
    %349 = arith.addf %347, %348 : vector<8x128xf32>
    %350 = arith.mulf %337, %349 : vector<8x128xf32>
    %351 = arith.addf %346, %350 : vector<8x128xf32>
    %352 = math.tanh %351 : vector<8x128xf32>
    %cst_278 = arith.constant 1.000000e+00 : f32
    %353 = vector.broadcast %cst_278 : f32 to vector<8x128xf32>
    %354 = arith.subf %353, %345 : vector<8x128xf32>
    %355 = arith.mulf %354, %352 : vector<8x128xf32>
    %356 = arith.mulf %345, %326 : vector<8x128xf32>
    %357 = arith.addf %355, %356 : vector<8x128xf32>
    %358 = arith.truncf %357 : vector<8x128xf32> to vector<8x128xbf16>
    %359 = vector.extract_strided_slice %262 {offsets = [24, 0], sizes = [8, 384], strides = [1, 1]} : vector<64x384xf32> to vector<8x384xf32>
    %cst_279 = arith.constant dense<0.000000e+00> : vector<8x384xf32>
    %360 = tpu.matmul %358, %263, %cst_279 {dimension_numbers = #tpu.dot_dimension_numbers<[1], [0], [0], [1], [0, 0, 1, 1], [], []>} : vector<8x128xbf16>, vector<128x384xbf16>, vector<8x384xf32> -> vector<8x384xf32>
    %361 = vector.extract_strided_slice %359 {offsets = [0, 0], sizes = [8, 128], strides = [1, 1]} : vector<8x384xf32> to vector<8x128xf32>
    %362 = vector.extract_strided_slice %360 {offsets = [0, 0], sizes = [8, 128], strides = [1, 1]} : vector<8x384xf32> to vector<8x128xf32>
    %363 = arith.addf %361, %362 : vector<8x128xf32>
    %364 = arith.negf %363 : vector<8x128xf32>
    %365 = math.exp %364 : vector<8x128xf32>
    %cst_280 = arith.constant 1.000000e+00 : f32
    %366 = vector.broadcast %cst_280 : f32 to vector<8x128xf32>
    %367 = arith.addf %366, %365 : vector<8x128xf32>
    %368 = arith.divf %366, %367 : vector<8x128xf32>
    %369 = vector.extract_strided_slice %359 {offsets = [0, 128], sizes = [8, 128], strides = [1, 1]} : vector<8x384xf32> to vector<8x128xf32>
    %370 = vector.extract_strided_slice %360 {offsets = [0, 128], sizes = [8, 128], strides = [1, 1]} : vector<8x384xf32> to vector<8x128xf32>
    %371 = arith.addf %369, %370 : vector<8x128xf32>
    %372 = arith.negf %371 : vector<8x128xf32>
    %373 = math.exp %372 : vector<8x128xf32>
    %cst_281 = arith.constant 1.000000e+00 : f32
    %374 = vector.broadcast %cst_281 : f32 to vector<8x128xf32>
    %375 = arith.addf %374, %373 : vector<8x128xf32>
    %376 = arith.divf %374, %375 : vector<8x128xf32>
    %377 = vector.extract_strided_slice %359 {offsets = [0, 256], sizes = [8, 128], strides = [1, 1]} : vector<8x384xf32> to vector<8x128xf32>
    %378 = vector.extract_strided_slice %360 {offsets = [0, 256], sizes = [8, 128], strides = [1, 1]} : vector<8x384xf32> to vector<8x128xf32>
    %379 = vector.broadcast %264 : vector<1x128xf32> to vector<8x128xf32>
    %380 = arith.addf %378, %379 : vector<8x128xf32>
    %381 = arith.mulf %368, %380 : vector<8x128xf32>
    %382 = arith.addf %377, %381 : vector<8x128xf32>
    %383 = math.tanh %382 : vector<8x128xf32>
    %cst_282 = arith.constant 1.000000e+00 : f32
    %384 = vector.broadcast %cst_282 : f32 to vector<8x128xf32>
    %385 = arith.subf %384, %376 : vector<8x128xf32>
    %386 = arith.mulf %385, %383 : vector<8x128xf32>
    %387 = arith.mulf %376, %357 : vector<8x128xf32>
    %388 = arith.addf %386, %387 : vector<8x128xf32>
    %389 = arith.truncf %388 : vector<8x128xf32> to vector<8x128xbf16>
    %390 = vector.extract_strided_slice %262 {offsets = [32, 0], sizes = [8, 384], strides = [1, 1]} : vector<64x384xf32> to vector<8x384xf32>
    %cst_283 = arith.constant dense<0.000000e+00> : vector<8x384xf32>
    %391 = tpu.matmul %389, %263, %cst_283 {dimension_numbers = #tpu.dot_dimension_numbers<[1], [0], [0], [1], [0, 0, 1, 1], [], []>} : vector<8x128xbf16>, vector<128x384xbf16>, vector<8x384xf32> -> vector<8x384xf32>
    %392 = vector.extract_strided_slice %390 {offsets = [0, 0], sizes = [8, 128], strides = [1, 1]} : vector<8x384xf32> to vector<8x128xf32>
    %393 = vector.extract_strided_slice %391 {offsets = [0, 0], sizes = [8, 128], strides = [1, 1]} : vector<8x384xf32> to vector<8x128xf32>
    %394 = arith.addf %392, %393 : vector<8x128xf32>
    %395 = arith.negf %394 : vector<8x128xf32>
    %396 = math.exp %395 : vector<8x128xf32>
    %cst_284 = arith.constant 1.000000e+00 : f32
    %397 = vector.broadcast %cst_284 : f32 to vector<8x128xf32>
    %398 = arith.addf %397, %396 : vector<8x128xf32>
    %399 = arith.divf %397, %398 : vector<8x128xf32>
    %400 = vector.extract_strided_slice %390 {offsets = [0, 128], sizes = [8, 128], strides = [1, 1]} : vector<8x384xf32> to vector<8x128xf32>
    %401 = vector.extract_strided_slice %391 {offsets = [0, 128], sizes = [8, 128], strides = [1, 1]} : vector<8x384xf32> to vector<8x128xf32>
    %402 = arith.addf %400, %401 : vector<8x128xf32>
    %403 = arith.negf %402 : vector<8x128xf32>
    %404 = math.exp %403 : vector<8x128xf32>
    %cst_285 = arith.constant 1.000000e+00 : f32
    %405 = vector.broadcast %cst_285 : f32 to vector<8x128xf32>
    %406 = arith.addf %405, %404 : vector<8x128xf32>
    %407 = arith.divf %405, %406 : vector<8x128xf32>
    %408 = vector.extract_strided_slice %390 {offsets = [0, 256], sizes = [8, 128], strides = [1, 1]} : vector<8x384xf32> to vector<8x128xf32>
    %409 = vector.extract_strided_slice %391 {offsets = [0, 256], sizes = [8, 128], strides = [1, 1]} : vector<8x384xf32> to vector<8x128xf32>
    %410 = vector.broadcast %264 : vector<1x128xf32> to vector<8x128xf32>
    %411 = arith.addf %409, %410 : vector<8x128xf32>
    %412 = arith.mulf %399, %411 : vector<8x128xf32>
    %413 = arith.addf %408, %412 : vector<8x128xf32>
    %414 = math.tanh %413 : vector<8x128xf32>
    %cst_286 = arith.constant 1.000000e+00 : f32
    %415 = vector.broadcast %cst_286 : f32 to vector<8x128xf32>
    %416 = arith.subf %415, %407 : vector<8x128xf32>
    %417 = arith.mulf %416, %414 : vector<8x128xf32>
    %418 = arith.mulf %407, %388 : vector<8x128xf32>
    %419 = arith.addf %417, %418 : vector<8x128xf32>
    %420 = arith.truncf %419 : vector<8x128xf32> to vector<8x128xbf16>
    %421 = vector.extract_strided_slice %262 {offsets = [40, 0], sizes = [8, 384], strides = [1, 1]} : vector<64x384xf32> to vector<8x384xf32>
    %cst_287 = arith.constant dense<0.000000e+00> : vector<8x384xf32>
    %422 = tpu.matmul %420, %263, %cst_287 {dimension_numbers = #tpu.dot_dimension_numbers<[1], [0], [0], [1], [0, 0, 1, 1], [], []>} : vector<8x128xbf16>, vector<128x384xbf16>, vector<8x384xf32> -> vector<8x384xf32>
    %423 = vector.extract_strided_slice %421 {offsets = [0, 0], sizes = [8, 128], strides = [1, 1]} : vector<8x384xf32> to vector<8x128xf32>
    %424 = vector.extract_strided_slice %422 {offsets = [0, 0], sizes = [8, 128], strides = [1, 1]} : vector<8x384xf32> to vector<8x128xf32>
    %425 = arith.addf %423, %424 : vector<8x128xf32>
    %426 = arith.negf %425 : vector<8x128xf32>
    %427 = math.exp %426 : vector<8x128xf32>
    %cst_288 = arith.constant 1.000000e+00 : f32
    %428 = vector.broadcast %cst_288 : f32 to vector<8x128xf32>
    %429 = arith.addf %428, %427 : vector<8x128xf32>
    %430 = arith.divf %428, %429 : vector<8x128xf32>
    %431 = vector.extract_strided_slice %421 {offsets = [0, 128], sizes = [8, 128], strides = [1, 1]} : vector<8x384xf32> to vector<8x128xf32>
    %432 = vector.extract_strided_slice %422 {offsets = [0, 128], sizes = [8, 128], strides = [1, 1]} : vector<8x384xf32> to vector<8x128xf32>
    %433 = arith.addf %431, %432 : vector<8x128xf32>
    %434 = arith.negf %433 : vector<8x128xf32>
    %435 = math.exp %434 : vector<8x128xf32>
    %cst_289 = arith.constant 1.000000e+00 : f32
    %436 = vector.broadcast %cst_289 : f32 to vector<8x128xf32>
    %437 = arith.addf %436, %435 : vector<8x128xf32>
    %438 = arith.divf %436, %437 : vector<8x128xf32>
    %439 = vector.extract_strided_slice %421 {offsets = [0, 256], sizes = [8, 128], strides = [1, 1]} : vector<8x384xf32> to vector<8x128xf32>
    %440 = vector.extract_strided_slice %422 {offsets = [0, 256], sizes = [8, 128], strides = [1, 1]} : vector<8x384xf32> to vector<8x128xf32>
    %441 = vector.broadcast %264 : vector<1x128xf32> to vector<8x128xf32>
    %442 = arith.addf %440, %441 : vector<8x128xf32>
    %443 = arith.mulf %430, %442 : vector<8x128xf32>
    %444 = arith.addf %439, %443 : vector<8x128xf32>
    %445 = math.tanh %444 : vector<8x128xf32>
    %cst_290 = arith.constant 1.000000e+00 : f32
    %446 = vector.broadcast %cst_290 : f32 to vector<8x128xf32>
    %447 = arith.subf %446, %438 : vector<8x128xf32>
    %448 = arith.mulf %447, %445 : vector<8x128xf32>
    %449 = arith.mulf %438, %419 : vector<8x128xf32>
    %450 = arith.addf %448, %449 : vector<8x128xf32>
    %451 = arith.truncf %450 : vector<8x128xf32> to vector<8x128xbf16>
    %452 = vector.extract_strided_slice %262 {offsets = [48, 0], sizes = [8, 384], strides = [1, 1]} : vector<64x384xf32> to vector<8x384xf32>
    %cst_291 = arith.constant dense<0.000000e+00> : vector<8x384xf32>
    %453 = tpu.matmul %451, %263, %cst_291 {dimension_numbers = #tpu.dot_dimension_numbers<[1], [0], [0], [1], [0, 0, 1, 1], [], []>} : vector<8x128xbf16>, vector<128x384xbf16>, vector<8x384xf32> -> vector<8x384xf32>
    %454 = vector.extract_strided_slice %452 {offsets = [0, 0], sizes = [8, 128], strides = [1, 1]} : vector<8x384xf32> to vector<8x128xf32>
    %455 = vector.extract_strided_slice %453 {offsets = [0, 0], sizes = [8, 128], strides = [1, 1]} : vector<8x384xf32> to vector<8x128xf32>
    %456 = arith.addf %454, %455 : vector<8x128xf32>
    %457 = arith.negf %456 : vector<8x128xf32>
    %458 = math.exp %457 : vector<8x128xf32>
    %cst_292 = arith.constant 1.000000e+00 : f32
    %459 = vector.broadcast %cst_292 : f32 to vector<8x128xf32>
    %460 = arith.addf %459, %458 : vector<8x128xf32>
    %461 = arith.divf %459, %460 : vector<8x128xf32>
    %462 = vector.extract_strided_slice %452 {offsets = [0, 128], sizes = [8, 128], strides = [1, 1]} : vector<8x384xf32> to vector<8x128xf32>
    %463 = vector.extract_strided_slice %453 {offsets = [0, 128], sizes = [8, 128], strides = [1, 1]} : vector<8x384xf32> to vector<8x128xf32>
    %464 = arith.addf %462, %463 : vector<8x128xf32>
    %465 = arith.negf %464 : vector<8x128xf32>
    %466 = math.exp %465 : vector<8x128xf32>
    %cst_293 = arith.constant 1.000000e+00 : f32
    %467 = vector.broadcast %cst_293 : f32 to vector<8x128xf32>
    %468 = arith.addf %467, %466 : vector<8x128xf32>
    %469 = arith.divf %467, %468 : vector<8x128xf32>
    %470 = vector.extract_strided_slice %452 {offsets = [0, 256], sizes = [8, 128], strides = [1, 1]} : vector<8x384xf32> to vector<8x128xf32>
    %471 = vector.extract_strided_slice %453 {offsets = [0, 256], sizes = [8, 128], strides = [1, 1]} : vector<8x384xf32> to vector<8x128xf32>
    %472 = vector.broadcast %264 : vector<1x128xf32> to vector<8x128xf32>
    %473 = arith.addf %471, %472 : vector<8x128xf32>
    %474 = arith.mulf %461, %473 : vector<8x128xf32>
    %475 = arith.addf %470, %474 : vector<8x128xf32>
    %476 = math.tanh %475 : vector<8x128xf32>
    %cst_294 = arith.constant 1.000000e+00 : f32
    %477 = vector.broadcast %cst_294 : f32 to vector<8x128xf32>
    %478 = arith.subf %477, %469 : vector<8x128xf32>
    %479 = arith.mulf %478, %476 : vector<8x128xf32>
    %480 = arith.mulf %469, %450 : vector<8x128xf32>
    %481 = arith.addf %479, %480 : vector<8x128xf32>
    %482 = arith.truncf %481 : vector<8x128xf32> to vector<8x128xbf16>
    %483 = vector.extract_strided_slice %262 {offsets = [56, 0], sizes = [8, 384], strides = [1, 1]} : vector<64x384xf32> to vector<8x384xf32>
    %cst_295 = arith.constant dense<0.000000e+00> : vector<8x384xf32>
    %484 = tpu.matmul %482, %263, %cst_295 {dimension_numbers = #tpu.dot_dimension_numbers<[1], [0], [0], [1], [0, 0, 1, 1], [], []>} : vector<8x128xbf16>, vector<128x384xbf16>, vector<8x384xf32> -> vector<8x384xf32>
    %485 = vector.extract_strided_slice %483 {offsets = [0, 0], sizes = [8, 128], strides = [1, 1]} : vector<8x384xf32> to vector<8x128xf32>
    %486 = vector.extract_strided_slice %484 {offsets = [0, 0], sizes = [8, 128], strides = [1, 1]} : vector<8x384xf32> to vector<8x128xf32>
    %487 = arith.addf %485, %486 : vector<8x128xf32>
    %488 = arith.negf %487 : vector<8x128xf32>
    %489 = math.exp %488 : vector<8x128xf32>
    %cst_296 = arith.constant 1.000000e+00 : f32
    %490 = vector.broadcast %cst_296 : f32 to vector<8x128xf32>
    %491 = arith.addf %490, %489 : vector<8x128xf32>
    %492 = arith.divf %490, %491 : vector<8x128xf32>
    %493 = vector.extract_strided_slice %483 {offsets = [0, 128], sizes = [8, 128], strides = [1, 1]} : vector<8x384xf32> to vector<8x128xf32>
    %494 = vector.extract_strided_slice %484 {offsets = [0, 128], sizes = [8, 128], strides = [1, 1]} : vector<8x384xf32> to vector<8x128xf32>
    %495 = arith.addf %493, %494 : vector<8x128xf32>
    %496 = arith.negf %495 : vector<8x128xf32>
    %497 = math.exp %496 : vector<8x128xf32>
    %cst_297 = arith.constant 1.000000e+00 : f32
    %498 = vector.broadcast %cst_297 : f32 to vector<8x128xf32>
    %499 = arith.addf %498, %497 : vector<8x128xf32>
    %500 = arith.divf %498, %499 : vector<8x128xf32>
    %501 = vector.extract_strided_slice %483 {offsets = [0, 256], sizes = [8, 128], strides = [1, 1]} : vector<8x384xf32> to vector<8x128xf32>
    %502 = vector.extract_strided_slice %484 {offsets = [0, 256], sizes = [8, 128], strides = [1, 1]} : vector<8x384xf32> to vector<8x128xf32>
    %503 = vector.broadcast %264 : vector<1x128xf32> to vector<8x128xf32>
    %504 = arith.addf %502, %503 : vector<8x128xf32>
    %505 = arith.mulf %492, %504 : vector<8x128xf32>
    %506 = arith.addf %501, %505 : vector<8x128xf32>
    %507 = math.tanh %506 : vector<8x128xf32>
    %cst_298 = arith.constant 1.000000e+00 : f32
    %508 = vector.broadcast %cst_298 : f32 to vector<8x128xf32>
    %509 = arith.subf %508, %500 : vector<8x128xf32>
    %510 = arith.mulf %509, %507 : vector<8x128xf32>
    %511 = arith.mulf %500, %481 : vector<8x128xf32>
    %512 = arith.addf %510, %511 : vector<8x128xf32>
    %c0_299 = arith.constant 0 : index
    %c0_300 = arith.constant 0 : index
    %513 = vector.load %arg6[%c0_299, %c0_300] : memref<1x128xf32, #tpu.memory_space<vmem>>, vector<1x128xf32>
    %514 = vector.broadcast %513 : vector<1x128xf32> to vector<8x128xf32>
    %515 = arith.mulf %512, %514 : vector<8x128xf32>
    %cst_301 = arith.constant dense<0.000000e+00> : vector<8xf32>
    %516 = vector.multi_reduction <add>, %515, %cst_301 [1] : vector<8x128xf32> to vector<8xf32>
    %517 = vector.shape_cast %516 : vector<8xf32> to vector<8x1xf32>
    %c0_302 = arith.constant 0 : index
    %518 = memref.load %arg7[%c0_302] : memref<1xf32, #tpu.memory_space<smem>>
    %519 = vector.broadcast %518 : f32 to vector<8x1xf32>
    %520 = arith.addf %517, %519 : vector<8x1xf32>
    %521 = arith.negf %520 : vector<8x1xf32>
    %522 = math.exp %521 : vector<8x1xf32>
    %cst_303 = arith.constant 1.000000e+00 : f32
    %523 = vector.broadcast %cst_303 : f32 to vector<8x1xf32>
    %524 = arith.addf %523, %522 : vector<8x1xf32>
    %525 = arith.divf %523, %524 : vector<8x1xf32>
    %526 = vector.shape_cast %525 : vector<8x1xf32> to vector<8x1xf32>
    %527 = vector.broadcast %526 : vector<8x1xf32> to vector<8x128xf32>
    %c0_304 = arith.constant 0 : index
    %c0_305 = arith.constant 0 : index
    %528 = vector.load %arg8[%c0_304, %c0_305] : memref<8x128xf32, #tpu.memory_space<vmem>>, vector<8x128xf32>
    tpu.vector_store %arg8[%c0_304, %c0_305], %527 {strides = array<i32>} : memref<8x128xf32, #tpu.memory_space<vmem>>, vector<8x128xf32>,
    return
  }
}

</mosaic_0001>

<llo_original>
// kernel: tpu_custom_call.1
$region0: #{tpu_custom_call.1}
  #allocation0 [shape = 'u32[]', space=smem, size = 0x4, offset = 0x4, fixed_abs, tag = 'smem constant byte address 0x4 - core index']
  #allocation1 [shape = 'u32[144,128]{1,0:T(1,128)}', space=vmem, size = 0x12000, scoped, tag = 'internal scratch']
  #allocation2 [shape = 'f32[64,128]{1,0:T(8,128)}', space=vmem, size = 0x8000, scoped, tag = 'scratch operand']
  #allocation3 [shape = 'f32[1]{0:T(128)S(6)}', space=smem, size = 0x200, scoped, tag = 'scoped memory for tpu_custom_call.1']
  %s0 = inlined_call_operand.hbm [shape: s32[8,8], index: 0, kind: input, shape index: {}]
  %s1 = inlined_call_operand.hbm [shape: f32[1000,128], index: 1, kind: input, shape index: {}]
  %s2 = inlined_call_operand.hbm [shape: bf16[128,384], index: 2, kind: input, shape index: {}]
  %s3 = inlined_call_operand.hbm [shape: bf16[128,384], index: 3, kind: input, shape index: {}]
  %s4 = inlined_call_operand.vmem [shape: f32[1,384], index: 4, kind: input, shape index: {}]
  %s5 = inlined_call_operand.vmem [shape: f32[1,128], index: 5, kind: input, shape index: {}]
  %s6 = inlined_call_operand.vmem [shape: f32[1,128], index: 6, kind: input, shape index: {}]
  %s7 = inlined_call_operand.<no memory space> [shape: f32[1], index: 7, kind: input, shape index: {}]
  %s8 = inlined_call_operand.hbm [shape: f32[8,128], index: 8, kind: output, shape index: {}]
  %s9 = sld [smem:[#allocation0]]
  $region58: #{tpu_custom_call.1} parent=0
    _
  %s11 = ssub.s32 1, %s9
  %s12 = scalar_select 0, %s11, %s9
  %13 = sst [smem:[#allocation3]] %s7
  $region1: #{tpu_custom_call.1} parent=0
    #allocation4 [shape = 'u8[4096]{0}', space=smem, size = 0x1000, scoped, tag = 'input window, operand 0, single buffered']
    #allocation5 [shape = 's32[1]{0}', space=sflag, size = 0x4, scoped, tag = 'scoped memory for tpu_custom_call.1']
    #allocation6 [shape = 's32[1]{0}', space=sflag, size = 0x4, scoped, tag = 'scoped memory for tpu_custom_call.1']
    #allocation7 [shape = 's32[1]{0}', space=sflag, size = 0x4, scoped, tag = 'scoped memory for tpu_custom_call.1']
    #allocation8 [shape = 'u8[512000]{0}', space=vmem, size = 0x7d000, scoped, tag = 'input window, operand 1, single buffered']
    #allocation9 [shape = 'u8[98304]{0}', space=vmem, size = 0x18000, scoped, tag = 'input window, operand 2, single buffered']
    #allocation10 [shape = 's32[1]{0}', space=sflag, size = 0x4, scoped, tag = 'scoped memory for tpu_custom_call.1']
    #allocation11 [shape = 'u8[98304]{0}', space=vmem, size = 0x18000, scoped, tag = 'input window, operand 3, single buffered']
    #allocation12 [shape = 'u8[4096]{0}', space=vmem, size = 0x1000, scoped, tag = 'output window, operand 0, single buffered']
    %14 = vsyncpa [#allocation7], 0
    %15 = vsyncpa [#allocation5], 0
    %16 = vsyncpa [#allocation10], 0
    %17 = vsyncpa [#allocation6], 0
    // Predicated region
    $region2: #{tpu_custom_call.1} parent=1 // pred_check
      _
    $region3: #{tpu_custom_call.1} parent=1 // pred_check_branch
      %19 = sbr.rel (0) target = $region5
    $region4: #{tpu_custom_call.1} parent=1 // pred_region
      %s21 = ssub.s32 128, 128
      %22 = vsyncadd [#allocation7], %s21
      %25 = dma.hbm_to_smem %s0, 128, [#allocation4], [#allocation7]
    $region5: #{tpu_custom_call.1} parent=1 // pred_fallthru
      _
    // Predicated region
    $region6: #{tpu_custom_call.1} parent=1 // pred_check
      _
    $region7: #{tpu_custom_call.1} parent=1 // pred_check_branch
      %27 = sbr.rel (0) target = $region9
    $region8: #{tpu_custom_call.1} parent=1 // pred_region
      %s29 = ssub.s32 16000, 16000
      %30 = vsyncadd [#allocation5], %s29
      %s31 = sshll.u32 [#allocation8], 4
      %s32 = int_to_ptr.vmem [resolvable:$true] %s31
      %37 = dma.hbm_to_vmem [thread:$0]  %s1, 16000, %s32, [#allocation5], 128, 128, 8
    $region9: #{tpu_custom_call.1} parent=1 // pred_fallthru
      _
    // Predicated region
    $region10: #{tpu_custom_call.1} parent=1 // pred_check
      _
    $region11: #{tpu_custom_call.1} parent=1 // pred_check_branch
      %39 = sbr.rel (0) target = $region13
    $region12: #{tpu_custom_call.1} parent=1 // pred_region
      %s41 = ssub.s32 3072, 3072
      %42 = vsyncadd [#allocation10], %s41
      %s43 = sshll.u32 [#allocation9], 4
      %s44 = int_to_ptr.vmem [resolvable:$true] %s43
      %49 = dma.hbm_to_vmem [thread:$0]  %s2, 3072, %s44, [#allocation10], 192, 192, 12
    $region13: #{tpu_custom_call.1} parent=1 // pred_fallthru
      _
    // Predicated region
    $region14: #{tpu_custom_call.1} parent=1 // pred_check
      _
    $region15: #{tpu_custom_call.1} parent=1 // pred_check_branch
      %51 = sbr.rel (0) target = $region17
    $region16: #{tpu_custom_call.1} parent=1 // pred_region
      %s53 = ssub.s32 3072, 3072
      %54 = vsyncadd [#allocation10], %s53
      %s55 = sshll.u32 [#allocation11], 4
      %s56 = int_to_ptr.vmem [resolvable:$true] %s55
      %61 = dma.hbm_to_vmem [thread:$0]  %s3, 3072, %s56, [#allocation10], 192, 192, 12
    $region17: #{tpu_custom_call.1} parent=1 // pred_fallthru
      _
    // Predicated region
    $region18: #{tpu_custom_call.1} parent=1 // pred_check
      _
    $region19: #{tpu_custom_call.1} parent=1 // pred_check_branch
      %63 = sbr.rel (0) target = $region21
    $region20: #{tpu_custom_call.1} parent=1 // pred_region
      _
    $region21: #{tpu_custom_call.1} parent=1 // pred_fallthru
      _
    // Predicated region
    $region22: #{tpu_custom_call.1} parent=1 // pred_check
      _
    $region23: #{tpu_custom_call.1} parent=1 // pred_check_branch
      %65 = sbr.rel (0) target = $region25
    $region24: #{tpu_custom_call.1} parent=1 // pred_region
      _
    $region25: #{tpu_custom_call.1} parent=1 // pred_fallthru
      _
    // Predicated region
    $region26: #{tpu_custom_call.1} parent=1 // pred_check
      _
    $region27: #{tpu_custom_call.1} parent=1 // pred_check_branch
      %67 = sbr.rel (0) target = $region29
    $region28: #{tpu_custom_call.1} parent=1 // pred_region
      _
    $region29: #{tpu_custom_call.1} parent=1 // pred_fallthru
      _
    // Predicated region
    $region30: #{tpu_custom_call.1} parent=1 // pred_check
      _
    $region31: #{tpu_custom_call.1} parent=1 // pred_check_branch
      %69 = sbr.rel (0) target = $region33
    $region32: #{tpu_custom_call.1} parent=1 // pred_region
      _
    $region33: #{tpu_custom_call.1} parent=1 // pred_fallthru
      _
    // Predicated region
    $region34: #{tpu_custom_call.1} parent=1 // pred_check
      _
    $region35: #{tpu_custom_call.1} parent=1 // pred_check_branch
      %71 = sbr.rel (0) target = $region37
    $region36: #{tpu_custom_call.1} parent=1 // pred_region
      %72 = dma.done [#allocation7], 128
    $region37: #{tpu_custom_call.1} parent=1 // pred_fallthru
      _
    // Predicated region
    $region38: #{tpu_custom_call.1} parent=1 // pred_check
      _
    $region39: #{tpu_custom_call.1} parent=1 // pred_check_branch
      %74 = sbr.rel (0) target = $region41
    $region40: #{tpu_custom_call.1} parent=1 // pred_region
      %75 = dma.done [#allocation5], 16000
    $region41: #{tpu_custom_call.1} parent=1 // pred_fallthru
      _
    // Predicated region
    $region42: #{tpu_custom_call.1} parent=1 // pred_check
      _
    $region43: #{tpu_custom_call.1} parent=1 // pred_check_branch
      %77 = sbr.rel (0) target = $region45
    $region44: #{tpu_custom_call.1} parent=1 // pred_region
      %78 = dma.done [#allocation10], 3072
    $region45: #{tpu_custom_call.1} parent=1 // pred_fallthru
      _
    // Predicated region
    $region46: #{tpu_custom_call.1} parent=1 // pred_check
      _
    $region47: #{tpu_custom_call.1} parent=1 // pred_check_branch
      %80 = sbr.rel (0) target = $region49
    $region48: #{tpu_custom_call.1} parent=1 // pred_region
      %81 = dma.done [#allocation10], 3072
    $region49: #{tpu_custom_call.1} parent=1 // pred_fallthru
      _
    %82 = sfence
    %s84 = sld [smem:[#allocation4]]
    %s85 = scalar_lea.vmem [#allocation8], %s84
    %v86 = vld [vmem:[%s85] sm:$0x1]
    %87 = vst [vmem:[#allocation2] sm:$0x1] %v86
    %s88 = sld [smem:[#allocation4 + $0x80]]
    %s89 = scalar_lea.vmem [#allocation8], %s88
    %v90 = vld [vmem:[%s89] sm:$0x1]
    %91 = vst [vmem:[#allocation2 + $0x1] sm:$0x1] %v90
    %s92 = sld [smem:[#allocation4 + $0x100]]
    %s93 = scalar_lea.vmem [#allocation8], %s92
    %v94 = vld [vmem:[%s93] sm:$0x1]
    %95 = vst [vmem:[#allocation2 + $0x2] sm:$0x1] %v94
    %s96 = sld [smem:[#allocation4 + $0x180]]
    %s97 = scalar_lea.vmem [#allocation8], %s96
    %v98 = vld [vmem:[%s97] sm:$0x1]
    %99 = vst [vmem:[#allocation2 + $0x3] sm:$0x1] %v98
    %s100 = sld [smem:[#allocation4 + $0x200]]
    %s101 = scalar_lea.vmem [#allocation8], %s100
    %v102 = vld [vmem:[%s101] sm:$0x1]
    %103 = vst [vmem:[#allocation2 + $0x4] sm:$0x1] %v102
    %s104 = sld [smem:[#allocation4 + $0x280]]
    %s105 = scalar_lea.vmem [#allocation8], %s104
    %v106 = vld [vmem:[%s105] sm:$0x1]
    %107 = vst [vmem:[#allocation2 + $0x5] sm:$0x1] %v106
    %s108 = sld [smem:[#allocation4 + $0x300]]
    %s109 = scalar_lea.vmem [#allocation8], %s108
    %v110 = vld [vmem:[%s109] sm:$0x1]
    %111 = vst [vmem:[#allocation2 + $0x6] sm:$0x1] %v110
    %s112 = sld [smem:[#allocation4 + $0x380]]
    %s113 = scalar_lea.vmem [#allocation8], %s112
    %v114 = vld [vmem:[%s113] sm:$0x1]
    %115 = vst [vmem:[#allocation2 + $0x7] sm:$0x1] %v114
    %s116 = sld [smem:[#allocation4 + $0x1]]
    %s117 = scalar_lea.vmem [#allocation8], %s116
    %v118 = vld [vmem:[%s117] sm:$0x1]
    %119 = vst [vmem:[#allocation2 + $0x8] sm:$0x1] %v118
    %s120 = sld [smem:[#allocation4 + $0x81]]
    %s121 = scalar_lea.vmem [#allocation8], %s120
    %v122 = vld [vmem:[%s121] sm:$0x1]
    %123 = vst [vmem:[#allocation2 + $0x9] sm:$0x1] %v122
    %s124 = sld [smem:[#allocation4 + $0x101]]
    %s125 = scalar_lea.vmem [#allocation8], %s124
    %v126 = vld [vmem:[%s125] sm:$0x1]
    %127 = vst [vmem:[#allocation2 + $0xa] sm:$0x1] %v126
    %s128 = sld [smem:[#allocation4 + $0x181]]
    %s129 = scalar_lea.vmem [#allocation8], %s128
    %v130 = vld [vmem:[%s129] sm:$0x1]
    %131 = vst [vmem:[#allocation2 + $0xb] sm:$0x1] %v130
    %s132 = sld [smem:[#allocation4 + $0x201]]
    %s133 = scalar_lea.vmem [#allocation8], %s132
    %v134 = vld [vmem:[%s133] sm:$0x1]
    %135 = vst [vmem:[#allocation2 + $0xc] sm:$0x1] %v134
    %s136 = sld [smem:[#allocation4 + $0x281]]
    %s137 = scalar_lea.vmem [#allocation8], %s136
    %v138 = vld [vmem:[%s137] sm:$0x1]
    %139 = vst [vmem:[#allocation2 + $0xd] sm:$0x1] %v138
    %s140 = sld [smem:[#allocation4 + $0x301]]
    %s141 = scalar_lea.vmem [#allocation8], %s140
    %v142 = vld [vmem:[%s141] sm:$0x1]
    %143 = vst [vmem:[#allocation2 + $0xe] sm:$0x1] %v142
    %s144 = sld [smem:[#allocation4 + $0x381]]
    %s145 = scalar_lea.vmem [#allocation8], %s144
    %v146 = vld [vmem:[%s145] sm:$0x1]
    %147 = vst [vmem:[#allocation2 + $0xf] sm:$0x1] %v146
    %s148 = sld [smem:[#allocation4 + $0x2]]
    %s149 = scalar_lea.vmem [#allocation8], %s148
    %v150 = vld [vmem:[%s149] sm:$0x1]
    %151 = vst [vmem:[#allocation2 + $0x10] sm:$0x1] %v150
    %s152 = sld [smem:[#allocation4 + $0x82]]
    %s153 = scalar_lea.vmem [#allocation8], %s152
    %v154 = vld [vmem:[%s153] sm:$0x1]
    %155 = vst [vmem:[#allocation2 + $0x11] sm:$0x1] %v154
    %s156 = sld [smem:[#allocation4 + $0x102]]
    %s157 = scalar_lea.vmem [#allocation8], %s156
    %v158 = vld [vmem:[%s157] sm:$0x1]
    %159 = vst [vmem:[#allocation2 + $0x12] sm:$0x1] %v158
    %s160 = sld [smem:[#allocation4 + $0x182]]
    %s161 = scalar_lea.vmem [#allocation8], %s160
    %v162 = vld [vmem:[%s161] sm:$0x1]
    %163 = vst [vmem:[#allocation2 + $0x13] sm:$0x1] %v162
    %s164 = sld [smem:[#allocation4 + $0x202]]
    %s165 = scalar_lea.vmem [#allocation8], %s164
    %v166 = vld [vmem:[%s165] sm:$0x1]
    %167 = vst [vmem:[#allocation2 + $0x14] sm:$0x1] %v166
    %s168 = sld [smem:[#allocation4 + $0x282]]
    %s169 = scalar_lea.vmem [#allocation8], %s168
    %v170 = vld [vmem:[%s169] sm:$0x1]
    %171 = vst [vmem:[#allocation2 + $0x15] sm:$0x1] %v170
    %s172 = sld [smem:[#allocation4 + $0x302]]
    %s173 = scalar_lea.vmem [#allocation8], %s172
    %v174 = vld [vmem:[%s173] sm:$0x1]
    %175 = vst [vmem:[#allocation2 + $0x16] sm:$0x1] %v174
    %s176 = sld [smem:[#allocation4 + $0x382]]
    %s177 = scalar_lea.vmem [#allocation8], %s176
    %v178 = vld [vmem:[%s177] sm:$0x1]
    %179 = vst [vmem:[#allocation2 + $0x17] sm:$0x1] %v178
    %s180 = sld [smem:[#allocation4 + $0x3]]
    %s181 = scalar_lea.vmem [#allocation8], %s180
    %v182 = vld [vmem:[%s181] sm:$0x1]
    %183 = vst [vmem:[#allocation2 + $0x18] sm:$0x1] %v182
    %s184 = sld [smem:[#allocation4 + $0x83]]
    %s185 = scalar_lea.vmem [#allocation8], %s184
    %v186 = vld [vmem:[%s185] sm:$0x1]
    %187 = vst [vmem:[#allocation2 + $0x19] sm:$0x1] %v186
    %s188 = sld [smem:[#allocation4 + $0x103]]
    %s189 = scalar_lea.vmem [#allocation8], %s188
    %v190 = vld [vmem:[%s189] sm:$0x1]
    %191 = vst [vmem:[#allocation2 + $0x1a] sm:$0x1] %v190
    %s192 = sld [smem:[#allocation4 + $0x183]]
    %s193 = scalar_lea.vmem [#allocation8], %s192
    %v194 = vld [vmem:[%s193] sm:$0x1]
    %195 = vst [vmem:[#allocation2 + $0x1b] sm:$0x1] %v194
    %s196 = sld [smem:[#allocation4 + $0x203]]
    %s197 = scalar_lea.vmem [#allocation8], %s196
    %v198 = vld [vmem:[%s197] sm:$0x1]
    %199 = vst [vmem:[#allocation2 + $0x1c] sm:$0x1] %v198
    %s200 = sld [smem:[#allocation4 + $0x283]]
    %s201 = scalar_lea.vmem [#allocation8], %s200
    %v202 = vld [vmem:[%s201] sm:$0x1]
    %203 = vst [vmem:[#allocation2 + $0x1d] sm:$0x1] %v202
    %s204 = sld [smem:[#allocation4 + $0x303]]
    %s205 = scalar_lea.vmem [#allocation8], %s204
    %v206 = vld [vmem:[%s205] sm:$0x1]
    %207 = vst [vmem:[#allocation2 + $0x1e] sm:$0x1] %v206
    %s208 = sld [smem:[#allocation4 + $0x383]]
    %s209 = scalar_lea.vmem [#allocation8], %s208
    %v210 = vld [vmem:[%s209] sm:$0x1]
    %211 = vst [vmem:[#allocation2 + $0x1f] sm:$0x1] %v210
    %s212 = sld [smem:[#allocation4 + $0x4]]
    %s213 = scalar_lea.vmem [#allocation8], %s212
    %v214 = vld [vmem:[%s213] sm:$0x1]
    %215 = vst [vmem:[#allocation2 + $0x20] sm:$0x1] %v214
    %s216 = sld [smem:[#allocation4 + $0x84]]
    %s217 = scalar_lea.vmem [#allocation8], %s216
    %v218 = vld [vmem:[%s217] sm:$0x1]
    %219 = vst [vmem:[#allocation2 + $0x21] sm:$0x1] %v218
    %s220 = sld [smem:[#allocation4 + $0x104]]
    %s221 = scalar_lea.vmem [#allocation8], %s220
    %v222 = vld [vmem:[%s221] sm:$0x1]
    %223 = vst [vmem:[#allocation2 + $0x22] sm:$0x1] %v222
    %s224 = sld [smem:[#allocation4 + $0x184]]
    %s225 = scalar_lea.vmem [#allocation8], %s224
    %v226 = vld [vmem:[%s225] sm:$0x1]
    %227 = vst [vmem:[#allocation2 + $0x23] sm:$0x1] %v226
    %s228 = sld [smem:[#allocation4 + $0x204]]
    %s229 = scalar_lea.vmem [#allocation8], %s228
    %v230 = vld [vmem:[%s229] sm:$0x1]
    %231 = vst [vmem:[#allocation2 + $0x24] sm:$0x1] %v230
    %s232 = sld [smem:[#allocation4 + $0x284]]
    %s233 = scalar_lea.vmem [#allocation8], %s232
    %v234 = vld [vmem:[%s233] sm:$0x1]
    %235 = vst [vmem:[#allocation2 + $0x25] sm:$0x1] %v234
    %s236 = sld [smem:[#allocation4 + $0x304]]
    %s237 = scalar_lea.vmem [#allocation8], %s236
    %v238 = vld [vmem:[%s237] sm:$0x1]
    %239 = vst [vmem:[#allocation2 + $0x26] sm:$0x1] %v238
    %s240 = sld [smem:[#allocation4 + $0x384]]
    %s241 = scalar_lea.vmem [#allocation8], %s240
    %v242 = vld [vmem:[%s241] sm:$0x1]
    %243 = vst [vmem:[#allocation2 + $0x27] sm:$0x1] %v242
    %s244 = sld [smem:[#allocation4 + $0x5]]
    %s245 = scalar_lea.vmem [#allocation8], %s244
    %v246 = vld [vmem:[%s245] sm:$0x1]
    %247 = vst [vmem:[#allocation2 + $0x28] sm:$0x1] %v246
    %s248 = sld [smem:[#allocation4 + $0x85]]
    %s249 = scalar_lea.vmem [#allocation8], %s248
    %v250 = vld [vmem:[%s249] sm:$0x1]
    %251 = vst [vmem:[#allocation2 + $0x29] sm:$0x1] %v250
    %s252 = sld [smem:[#allocation4 + $0x105]]
    %s253 = scalar_lea.vmem [#allocation8], %s252
    %v254 = vld [vmem:[%s253] sm:$0x1]
    %255 = vst [vmem:[#allocation2 + $0x2a] sm:$0x1] %v254
    %s256 = sld [smem:[#allocation4 + $0x185]]
    %s257 = scalar_lea.vmem [#allocation8], %s256
    %v258 = vld [vmem:[%s257] sm:$0x1]
    %259 = vst [vmem:[#allocation2 + $0x2b] sm:$0x1] %v258
    %s260 = sld [smem:[#allocation4 + $0x205]]
    %s261 = scalar_lea.vmem [#allocation8], %s260
    %v262 = vld [vmem:[%s261] sm:$0x1]
    %263 = vst [vmem:[#allocation2 + $0x2c] sm:$0x1] %v262
    %s264 = sld [smem:[#allocation4 + $0x285]]
    %s265 = scalar_lea.vmem [#allocation8], %s264
    %v266 = vld [vmem:[%s265] sm:$0x1]
    %267 = vst [vmem:[#allocation2 + $0x2d] sm:$0x1] %v266
    %s268 = sld [smem:[#allocation4 + $0x305]]
    %s269 = scalar_lea.vmem [#allocation8], %s268
    %v270 = vld [vmem:[%s269] sm:$0x1]
    %271 = vst [vmem:[#allocation2 + $0x2e] sm:$0x1] %v270
    %s272 = sld [smem:[#allocation4 + $0x385]]
    %s273 = scalar_lea.vmem [#allocation8], %s272
    %v274 = vld [vmem:[%s273] sm:$0x1]
    %275 = vst [vmem:[#allocation2 + $0x2f] sm:$0x1] %v274
    %s276 = sld [smem:[#allocation4 + $0x6]]
    %s277 = scalar_lea.vmem [#allocation8], %s276
    %v278 = vld [vmem:[%s277] sm:$0x1]
    %279 = vst [vmem:[#allocation2 + $0x30] sm:$0x1] %v278
    %s280 = sld [smem:[#allocation4 + $0x86]]
    %s281 = scalar_lea.vmem [#allocation8], %s280
    %v282 = vld [vmem:[%s281] sm:$0x1]
    %283 = vst [vmem:[#allocation2 + $0x31] sm:$0x1] %v282
    %s284 = sld [smem:[#allocation4 + $0x106]]
    %s285 = scalar_lea.vmem [#allocation8], %s284
    %v286 = vld [vmem:[%s285] sm:$0x1]
    %287 = vst [vmem:[#allocation2 + $0x32] sm:$0x1] %v286
    %s288 = sld [smem:[#allocation4 + $0x186]]
    %s289 = scalar_lea.vmem [#allocation8], %s288
    %v290 = vld [vmem:[%s289] sm:$0x1]
    %291 = vst [vmem:[#allocation2 + $0x33] sm:$0x1] %v290
    %s292 = sld [smem:[#allocation4 + $0x206]]
    %s293 = scalar_lea.vmem [#allocation8], %s292
    %v294 = vld [vmem:[%s293] sm:$0x1]
    %295 = vst [vmem:[#allocation2 + $0x34] sm:$0x1] %v294
    %s296 = sld [smem:[#allocation4 + $0x286]]
    %s297 = scalar_lea.vmem [#allocation8], %s296
    %v298 = vld [vmem:[%s297] sm:$0x1]
    %299 = vst [vmem:[#allocation2 + $0x35] sm:$0x1] %v298
    %s300 = sld [smem:[#allocation4 + $0x306]]
    %s301 = scalar_lea.vmem [#allocation8], %s300
    %v302 = vld [vmem:[%s301] sm:$0x1]
    %303 = vst [vmem:[#allocation2 + $0x36] sm:$0x1] %v302
    %s304 = sld [smem:[#allocation4 + $0x386]]
    %s305 = scalar_lea.vmem [#allocation8], %s304
    %v306 = vld [vmem:[%s305] sm:$0x1]
    %307 = vst [vmem:[#allocation2 + $0x37] sm:$0x1] %v306
    %s308 = sld [smem:[#allocation4 + $0x7]]
    %s309 = scalar_lea.vmem [#allocation8], %s308
    %v310 = vld [vmem:[%s309] sm:$0x1]
    %311 = vst [vmem:[#allocation2 + $0x38] sm:$0x1] %v310
    %s312 = sld [smem:[#allocation4 + $0x87]]
    %s313 = scalar_lea.vmem [#allocation8], %s312
    %v314 = vld [vmem:[%s313] sm:$0x1]
    %315 = vst [vmem:[#allocation2 + $0x39] sm:$0x1] %v314
    %s316 = sld [smem:[#allocation4 + $0x107]]
    %s317 = scalar_lea.vmem [#allocation8], %s316
    %v318 = vld [vmem:[%s317] sm:$0x1]
    %319 = vst [vmem:[#allocation2 + $0x3a] sm:$0x1] %v318
    %s320 = sld [smem:[#allocation4 + $0x187]]
    %s321 = scalar_lea.vmem [#allocation8], %s320
    %v322 = vld [vmem:[%s321] sm:$0x1]
    %323 = vst [vmem:[#allocation2 + $0x3b] sm:$0x1] %v322
    %s324 = sld [smem:[#allocation4 + $0x207]]
    %s325 = scalar_lea.vmem [#allocation8], %s324
    %v326 = vld [vmem:[%s325] sm:$0x1]
    %327 = vst [vmem:[#allocation2 + $0x3c] sm:$0x1] %v326
    %s328 = sld [smem:[#allocation4 + $0x287]]
    %s329 = scalar_lea.vmem [#allocation8], %s328
    %v330 = vld [vmem:[%s329] sm:$0x1]
    %331 = vst [vmem:[#allocation2 + $0x3d] sm:$0x1] %v330
    %s332 = sld [smem:[#allocation4 + $0x307]]
    %s333 = scalar_lea.vmem [#allocation8], %s332
    %v334 = vld [vmem:[%s333] sm:$0x1]
    %335 = vst [vmem:[#allocation2 + $0x3e] sm:$0x1] %v334
    %s336 = sld [smem:[#allocation4 + $0x387]]
    %s337 = scalar_lea.vmem [#allocation8], %s336
    %v338 = vld [vmem:[%s337] sm:$0x1]
    %339 = vst [vmem:[#allocation2 + $0x3f] sm:$0x1] %v338
    %v340 = vld [vmem:[#allocation2] sm:$0xff]
    %v341 = vld [vmem:[#allocation2 + $0x8] sm:$0xff]
    %v342 = vld [vmem:[#allocation2 + $0x10] sm:$0xff]
    %v343 = vld [vmem:[#allocation2 + $0x18] sm:$0xff]
    %v344 = vld [vmem:[#allocation2 + $0x20] sm:$0xff]
    %v345 = vld [vmem:[#allocation2 + $0x28] sm:$0xff]
    %v346 = vld [vmem:[#allocation2 + $0x30] sm:$0xff]
    %v347 = vld [vmem:[#allocation2 + $0x38] sm:$0xff]
    %v348 = vpack.c.bf16 %v341, %v340
    %v349 = vpack.c.bf16 %v343, %v342
    %v350 = vpack.c.bf16 %v345, %v344
    %v351 = vpack.c.bf16 %v347, %v346
    %v352 = vld [vmem:[#allocation9] sm:$0xff]
    %v353 = vld [vmem:[#allocation9 + $0x8] sm:$0xf]
    %v354 = vld [vmem:[#allocation9 + $0xc] sm:$0xff]
    %v355 = vld [vmem:[#allocation9 + $0x14] sm:$0xf]
    %v356 = vld [vmem:[#allocation9 + $0x18] sm:$0xff]
    %v357 = vld [vmem:[#allocation9 + $0x20] sm:$0xf]
    %v358 = vld [vmem:[#allocation9 + $0x24] sm:$0xff]
    %v359 = vld [vmem:[#allocation9 + $0x2c] sm:$0xf]
    %v360 = vld [vmem:[#allocation9 + $0x30] sm:$0xff]
    %v361 = vld [vmem:[#allocation9 + $0x38] sm:$0xf]
    %v362 = vld [vmem:[#allocation9 + $0x3c] sm:$0xff]
    %v363 = vld [vmem:[#allocation9 + $0x44] sm:$0xf]
    %v364 = vld [vmem:[#allocation9 + $0x48] sm:$0xff]
    %v365 = vld [vmem:[#allocation9 + $0x50] sm:$0xf]
    %v366 = vld [vmem:[#allocation9 + $0x54] sm:$0xff]
    %v367 = vld [vmem:[#allocation9 + $0x5c] sm:$0xf]
    %v368 = vld [vmem:[#allocation9 + $0x60] sm:$0xff]
    %v369 = vld [vmem:[#allocation9 + $0x68] sm:$0xf]
    %v370 = vld [vmem:[#allocation9 + $0x6c] sm:$0xff]
    %v371 = vld [vmem:[#allocation9 + $0x74] sm:$0xf]
    %v372 = vld [vmem:[#allocation9 + $0x78] sm:$0xff]
    %v373 = vld [vmem:[#allocation9 + $0x80] sm:$0xf]
    %v374 = vld [vmem:[#allocation9 + $0x84] sm:$0xff]
    %v375 = vld [vmem:[#allocation9 + $0x8c] sm:$0xf]
    %v376 = vld [vmem:[#allocation9 + $0x90] sm:$0xff]
    %v377 = vld [vmem:[#allocation9 + $0x98] sm:$0xf]
    %v378 = vld [vmem:[#allocation9 + $0x9c] sm:$0xff]
    %v379 = vld [vmem:[#allocation9 + $0xa4] sm:$0xf]
    %v380 = vld [vmem:[#allocation9 + $0xa8] sm:$0xff]
    %v381 = vld [vmem:[#allocation9 + $0xb0] sm:$0xf]
    %v382 = vld [vmem:[#allocation9 + $0xb4] sm:$0xff]
    %v383 = vld [vmem:[#allocation9 + $0xbc] sm:$0xf]
    %v384 = vld [vmem:[%s4] sm:$0x7]
    %v386 = vlaneseq
    %v387 = vshrl.u32 %v386, 7
    %v388 = vsub.s32 0, %v387
    %v389 = vrot.slane %v384, %v388
    %v390 = vlaneseq
    %v391 = vshrl.u32 %v390, 7
    %v392 = vsub.s32 1, %v391
    %v393 = vrot.slane %v384, %v392
    %v394 = vlaneseq
    %v395 = vshrl.u32 %v394, 7
    %v396 = vsub.s32 2, %v395
    %v397 = vrot.slane %v384, %v396
    %v433 = vunpack.c.l.b16 %v352
    %v434 = vunpack.c.h.b16 %v352
    %v435 = vunpack.c.l.b16 %v353
    %v436 = vunpack.c.l.b16 %v354
    %v437 = vunpack.c.h.b16 %v354
    %v438 = vunpack.c.l.b16 %v355
    %v439 = vunpack.c.l.b16 %v356
    %v440 = vunpack.c.h.b16 %v356
    %v441 = vunpack.c.l.b16 %v357
    %v442 = vunpack.c.l.b16 %v358
    %v443 = vunpack.c.h.b16 %v358
    %v444 = vunpack.c.l.b16 %v359
    %v445 = vunpack.c.l.b16 %v360
    %v446 = vunpack.c.h.b16 %v360
    %v447 = vunpack.c.l.b16 %v361
    %v448 = vunpack.c.l.b16 %v362
    %v449 = vunpack.c.h.b16 %v362
    %v450 = vunpack.c.l.b16 %v363
    %v451 = vunpack.c.l.b16 %v364
    %v452 = vunpack.c.h.b16 %v364
    %v453 = vunpack.c.l.b16 %v365
    %v454 = vunpack.c.l.b16 %v366
    %v455 = vunpack.c.h.b16 %v366
    %v456 = vunpack.c.l.b16 %v367
    %v457 = vunpack.c.l.b16 %v368
    %v458 = vunpack.c.h.b16 %v368
    %v459 = vunpack.c.l.b16 %v369
    %v460 = vunpack.c.l.b16 %v370
    %v461 = vunpack.c.h.b16 %v370
    %v462 = vunpack.c.l.b16 %v371
    %v463 = vunpack.c.l.b16 %v372
    %v464 = vunpack.c.h.b16 %v372
    %v465 = vunpack.c.l.b16 %v373
    %v466 = vunpack.c.l.b16 %v374
    %v467 = vunpack.c.h.b16 %v374
    %v468 = vunpack.c.l.b16 %v375
    %v469 = vunpack.c.l.b16 %v376
    %v470 = vunpack.c.h.b16 %v376
    %v471 = vunpack.c.l.b16 %v377
    %v472 = vunpack.c.l.b16 %v378
    %v473 = vunpack.c.h.b16 %v378
    %v474 = vunpack.c.l.b16 %v379
    %v475 = vunpack.c.l.b16 %v380
    %v476 = vunpack.c.h.b16 %v380
    %v477 = vunpack.c.l.b16 %v381
    %v478 = vunpack.c.l.b16 %v382
    %v479 = vunpack.c.h.b16 %v382
    %v480 = vunpack.c.l.b16 %v383
    %v481 = vpack.c.b16 %v436, %v433
    %v482 = vpack.c.b16 %v437, %v434
    %v483 = vpack.c.b16 %v438, %v435
    %v484 = vpack.c.b16 %v442, %v439
    %v485 = vpack.c.b16 %v443, %v440
    %v486 = vpack.c.b16 %v444, %v441
    %v487 = vpack.c.b16 %v448, %v445
    %v488 = vpack.c.b16 %v449, %v446
    %v489 = vpack.c.b16 %v450, %v447
    %v490 = vpack.c.b16 %v454, %v451
    %v491 = vpack.c.b16 %v455, %v452
    %v492 = vpack.c.b16 %v456, %v453
    %v493 = vpack.c.b16 %v460, %v457
    %v494 = vpack.c.b16 %v461, %v458
    %v495 = vpack.c.b16 %v462, %v459
    %v496 = vpack.c.b16 %v466, %v463
    %v497 = vpack.c.b16 %v467, %v464
    %v498 = vpack.c.b16 %v468, %v465
    %v499 = vpack.c.b16 %v472, %v469
    %v500 = vpack.c.b16 %v473, %v470
    %v501 = vpack.c.b16 %v474, %v471
    %v502 = vpack.c.b16 %v478, %v475
    %v503 = vpack.c.b16 %v479, %v476
    %v504 = vpack.c.b16 %v480, %v477
    %529 = vmatprep.subr.bf16.mxu0 %v482
    %530 = vmatpush1.bf16.msra.mxu0 %v481
    %531 = vmatprep.subr.bf16.mxu0 %v485
    %532 = vmatpush1.bf16.msra.mxu0 %v484
    %533 = vmatprep.subr.bf16.mxu0 %v488
    %534 = vmatpush1.bf16.msra.mxu0 %v487
    %535 = vmatprep.subr.bf16.mxu0 %v491
    %536 = vmatpush1.bf16.msra.mxu0 %v490
    %537 = vmatprep.subr.bf16.mxu0 %v494
    %538 = vmatpush1.bf16.msra.mxu0 %v493
    %539 = vmatprep.subr.bf16.mxu0 %v497
    %540 = vmatpush1.bf16.msra.mxu0 %v496
    %541 = vmatprep.subr.bf16.mxu0 %v500
    %542 = vmatpush1.bf16.msra.mxu0 %v499
    %543 = vmatprep.subr.bf16.mxu0 %v503
    %544 = vmatpush1.bf16.msra.mxu0 %v502
    %545 = vmatprep.subr.bf16.mxu0 0
    %546 = vmatpush1.bf16.msra.mxu0 0
    %547 = vmatprep.subr.bf16.mxu0 0
    %548 = vmatpush1.bf16.msra.mxu0 0
    %549 = vmatprep.subr.bf16.mxu0 0
    %550 = vmatpush1.bf16.msra.mxu0 0
    %551 = vmatprep.subr.bf16.mxu0 0
    %552 = vmatpush1.bf16.msra.mxu0 0
    %553 = vmatprep.subr.bf16.mxu0 0
    %554 = vmatpush1.bf16.msra.mxu0 0
    %555 = vmatprep.subr.bf16.mxu0 0
    %556 = vmatpush1.bf16.msra.mxu0 0
    %557 = vmatprep.subr.bf16.mxu0 0
    %558 = vmatpush1.bf16.msra.mxu0 0
    %559 = vmatprep.subr.bf16.mxu0 0
    %560 = vmatpush1.bf16.msra.mxu0 0
    %561 = vmatprep.mubr.bf16.mxu0 0
    %562 = vmatmul.mubr.bf16.gmra.mrb[0].mxu0 %v348
    %v563 = vpop.f32.mrb[0].mxu0
    %v564 = vadd.f32 %v389, %v563
    %v565 = vpop.f32.mrb[0].mxu0
    %v566 = vadd.f32 %v393, %v565
    %v567 = vpop.f32.mrb[0].mxu0
    %v568 = vadd.f32 %v389, %v567
    %v569 = vpop.f32.mrb[0].mxu0
    %v570 = vadd.f32 %v393, %v569
    %571 = vmatprep.mubr.bf16.mxu0 0
    %572 = vmatmul.mubr.bf16.gmra.mrb[0].mxu0 %v349
    %v573 = vpop.f32.mrb[0].mxu0
    %v574 = vadd.f32 %v389, %v573
    %v575 = vpop.f32.mrb[0].mxu0
    %v576 = vadd.f32 %v393, %v575
    %v577 = vpop.f32.mrb[0].mxu0
    %v578 = vadd.f32 %v389, %v577
    %v579 = vpop.f32.mrb[0].mxu0
    %v580 = vadd.f32 %v393, %v579
    %581 = vmatprep.mubr.bf16.mxu0 0
    %582 = vmatmul.mubr.bf16.gmra.mrb[0].mxu0 %v350
    %v583 = vpop.f32.mrb[0].mxu0
    %v584 = vadd.f32 %v389, %v583
    %v585 = vpop.f32.mrb[0].mxu0
    %v586 = vadd.f32 %v393, %v585
    %v587 = vpop.f32.mrb[0].mxu0
    %v588 = vadd.f32 %v389, %v587
    %v589 = vpop.f32.mrb[0].mxu0
    %v590 = vadd.f32 %v393, %v589
    %591 = vmatprep.mubr.bf16.mxu0 0
    %592 = vmatmul.mubr.bf16.gmra.mrb[0].mxu0 %v351
    %v593 = vpop.f32.mrb[0].mxu0
    %v594 = vadd.f32 %v389, %v593
    %v595 = vpop.f32.mrb[0].mxu0
    %v596 = vadd.f32 %v393, %v595
    %v597 = vpop.f32.mrb[0].mxu0
    %v598 = vadd.f32 %v389, %v597
    %v599 = vpop.f32.mrb[0].mxu0
    %v600 = vadd.f32 %v393, %v599
    %601 = vdwg.mxu0
    %602 = vmatprep.subr.bf16.mxu0 0
    %603 = vmatpush1.bf16.msra.mxu0 %v483
    %604 = vmatprep.subr.bf16.mxu0 0
    %605 = vmatpush1.bf16.msra.mxu0 %v486
    %606 = vmatprep.subr.bf16.mxu0 0
    %607 = vmatpush1.bf16.msra.mxu0 %v489
    %608 = vmatprep.subr.bf16.mxu0 0
    %609 = vmatpush1.bf16.msra.mxu0 %v492
    %610 = vmatprep.subr.bf16.mxu0 0
    %611 = vmatpush1.bf16.msra.mxu0 %v495
    %612 = vmatprep.subr.bf16.mxu0 0
    %613 = vmatpush1.bf16.msra.mxu0 %v498
    %614 = vmatprep.subr.bf16.mxu0 0
    %615 = vmatpush1.bf16.msra.mxu0 %v501
    %616 = vmatprep.subr.bf16.mxu0 0
    %617 = vmatpush1.bf16.msra.mxu0 %v504
    %618 = vmatprep.subr.bf16.mxu0 0
    %619 = vmatpush1.bf16.msra.mxu0 0
    %620 = vmatprep.subr.bf16.mxu0 0
    %621 = vmatpush1.bf16.msra.mxu0 0
    %622 = vmatprep.subr.bf16.mxu0 0
    %623 = vmatpush1.bf16.msra.mxu0 0
    %624 = vmatprep.subr.bf16.mxu0 0
    %625 = vmatpush1.bf16.msra.mxu0 0
    %626 = vmatprep.subr.bf16.mxu0 0
    %627 = vmatpush1.bf16.msra.mxu0 0
    %628 = vmatprep.subr.bf16.mxu0 0
    %629 = vmatpush1.bf16.msra.mxu0 0
    %630 = vmatprep.subr.bf16.mxu0 0
    %631 = vmatpush1.bf16.msra.mxu0 0
    %632 = vmatprep.subr.bf16.mxu0 0
    %633 = vmatpush1.bf16.msra.mxu0 0
    %634 = vmatprep.mubr.bf16.mxu0 0
    %635 = vmatmul.mubr.bf16.gmra.mrb[0].mxu0 %v348
    %v636 = vpop.f32.mrb[0].mxu0
    %v637 = vadd.f32 %v397, %v636
    %v638 = vpop.f32.mrb[0].mxu0
    %v639 = vpop.f32.mrb[0].mxu0
    %v640 = vadd.f32 %v397, %v639
    %v641 = vpop.f32.mrb[0].mxu0
    %642 = vmatprep.mubr.bf16.mxu0 0
    %643 = vmatmul.mubr.bf16.gmra.mrb[0].mxu0 %v349
    %v644 = vpop.f32.mrb[0].mxu0
    %v645 = vadd.f32 %v397, %v644
    %v646 = vpop.f32.mrb[0].mxu0
    %v647 = vpop.f32.mrb[0].mxu0
    %v648 = vadd.f32 %v397, %v647
    %v649 = vpop.f32.mrb[0].mxu0
    %650 = vmatprep.mubr.bf16.mxu0 0
    %651 = vmatmul.mubr.bf16.gmra.mrb[0].mxu0 %v350
    %v652 = vpop.f32.mrb[0].mxu0
    %v653 = vadd.f32 %v397, %v652
    %v654 = vpop.f32.mrb[0].mxu0
    %v655 = vpop.f32.mrb[0].mxu0
    %v656 = vadd.f32 %v397, %v655
    %v657 = vpop.f32.mrb[0].mxu0
    %658 = vmatprep.mubr.bf16.mxu0 0
    %659 = vmatmul.mubr.bf16.gmra.mrb[0].mxu0 %v351
    %v660 = vpop.f32.mrb[0].mxu0
    %v661 = vadd.f32 %v397, %v660
    %v662 = vpop.f32.mrb[0].mxu0
    %v663 = vpop.f32.mrb[0].mxu0
    %v664 = vadd.f32 %v397, %v663
    %v665 = vpop.f32.mrb[0].mxu0
    %666 = vdwg.mxu0
    %v667 = vld [vmem:[#allocation11] sm:$0xff]
    %v668 = vld [vmem:[#allocation11 + $0x8] sm:$0xf]
    %v669 = vld [vmem:[#allocation11 + $0xc] sm:$0xff]
    %v670 = vld [vmem:[#allocation11 + $0x14] sm:$0xf]
    %v671 = vld [vmem:[#allocation11 + $0x18] sm:$0xff]
    %v672 = vld [vmem:[#allocation11 + $0x20] sm:$0xf]
    %v673 = vld [vmem:[#allocation11 + $0x24] sm:$0xff]
    %v674 = vld [vmem:[#allocation11 + $0x2c] sm:$0xf]
    %v675 = vld [vmem:[#allocation11 + $0x30] sm:$0xff]
    %v676 = vld [vmem:[#allocation11 + $0x38] sm:$0xf]
    %v677 = vld [vmem:[#allocation11 + $0x3c] sm:$0xff]
    %v678 = vld [vmem:[#allocation11 + $0x44] sm:$0xf]
    %v679 = vld [vmem:[#allocation11 + $0x48] sm:$0xff]
    %v680 = vld [vmem:[#allocation11 + $0x50] sm:$0xf]
    %v681 = vld [vmem:[#allocation11 + $0x54] sm:$0xff]
    %v682 = vld [vmem:[#allocation11 + $0x5c] sm:$0xf]
    %v683 = vld [vmem:[#allocation11 + $0x60] sm:$0xff]
    %v684 = vld [vmem:[#allocation11 + $0x68] sm:$0xf]
    %v685 = vld [vmem:[#allocation11 + $0x6c] sm:$0xff]
    %v686 = vld [vmem:[#allocation11 + $0x74] sm:$0xf]
    %v687 = vld [vmem:[#allocation11 + $0x78] sm:$0xff]
    %v688 = vld [vmem:[#allocation11 + $0x80] sm:$0xf]
    %v689 = vld [vmem:[#allocation11 + $0x84] sm:$0xff]
    %v690 = vld [vmem:[#allocation11 + $0x8c] sm:$0xf]
    %v691 = vld [vmem:[#allocation11 + $0x90] sm:$0xff]
    %v692 = vld [vmem:[#allocation11 + $0x98] sm:$0xf]
    %v693 = vld [vmem:[#allocation11 + $0x9c] sm:$0xff]
    %v694 = vld [vmem:[#allocation11 + $0xa4] sm:$0xf]
    %v695 = vld [vmem:[#allocation11 + $0xa8] sm:$0xff]
    %v696 = vld [vmem:[#allocation11 + $0xb0] sm:$0xf]
    %v697 = vld [vmem:[#allocation11 + $0xb4] sm:$0xff]
    %v698 = vld [vmem:[#allocation11 + $0xbc] sm:$0xf]
    %v699 = vld [vmem:[%s5] sm:$0x1]
    %v700 = vadd.f32 %v564, 0.0
    %v701 = vxor.u32 %v700, 2147483648
    %v702 = vmul.f32 %v701, 1.442695
    %v703 = vpow.pop %v702
    %v704 = vadd.f32 %v703, 1.0
    %v705 = vrcp.pop %v704
    %v706 = vmul.f32 1.0, %v705
    %v707 = vadd.f32 %v566, 0.0
    %v708 = vxor.u32 %v707, 2147483648
    %v709 = vmul.f32 %v708, 1.442695
    %v710 = vpow.pop %v709
    %v711 = vadd.f32 %v710, 1.0
    %v712 = vrcp.pop %v711
    %v713 = vmul.f32 1.0, %v712
    %v715 = vlaneseq
    %v716 = vshrl.u32 %v715, 7
    %v717 = vsub.s32 0, %v716
    %v718 = vrot.slane %v699, %v717
    %v720 = vadd.f32 %v718, 0.0
    %v721 = vmul.f32 %v706, %v720
    %v722 = vadd.f32 %v637, %v721
    %v723 = vtanh.pop %v722
    %v724 = vsub.f32 1.0, %v713
    %v725 = vmul.f32 %v724, %v723
    %v726 = vmul.f32 %v713, 0.0
    %v727 = vadd.f32 %v725, %v726
    %v728 = vpack.c.bf16 %v727, %v727
    %v761 = vunpack.c.l.b16 %v667
    %v762 = vunpack.c.h.b16 %v667
    %v763 = vunpack.c.l.b16 %v668
    %v764 = vunpack.c.l.b16 %v669
    %v765 = vunpack.c.h.b16 %v669
    %v766 = vunpack.c.l.b16 %v670
    %v767 = vunpack.c.l.b16 %v671
    %v768 = vunpack.c.h.b16 %v671
    %v769 = vunpack.c.l.b16 %v672
    %v770 = vunpack.c.l.b16 %v673
    %v771 = vunpack.c.h.b16 %v673
    %v772 = vunpack.c.l.b16 %v674
    %v773 = vunpack.c.l.b16 %v675
    %v774 = vunpack.c.h.b16 %v675
    %v775 = vunpack.c.l.b16 %v676
    %v776 = vunpack.c.l.b16 %v677
    %v777 = vunpack.c.h.b16 %v677
    %v778 = vunpack.c.l.b16 %v678
    %v779 = vunpack.c.l.b16 %v679
    %v780 = vunpack.c.h.b16 %v679
    %v781 = vunpack.c.l.b16 %v680
    %v782 = vunpack.c.l.b16 %v681
    %v783 = vunpack.c.h.b16 %v681
    %v784 = vunpack.c.l.b16 %v682
    %v785 = vunpack.c.l.b16 %v683
    %v786 = vunpack.c.h.b16 %v683
    %v787 = vunpack.c.l.b16 %v684
    %v788 = vunpack.c.l.b16 %v685
    %v789 = vunpack.c.h.b16 %v685
    %v790 = vunpack.c.l.b16 %v686
    %v791 = vunpack.c.l.b16 %v687
    %v792 = vunpack.c.h.b16 %v687
    %v793 = vunpack.c.l.b16 %v688
    %v794 = vunpack.c.l.b16 %v689
    %v795 = vunpack.c.h.b16 %v689
    %v796 = vunpack.c.l.b16 %v690
    %v797 = vunpack.c.l.b16 %v691
    %v798 = vunpack.c.h.b16 %v691
    %v799 = vunpack.c.l.b16 %v692
    %v800 = vunpack.c.l.b16 %v693
    %v801 = vunpack.c.h.b16 %v693
    %v802 = vunpack.c.l.b16 %v694
    %v803 = vunpack.c.l.b16 %v695
    %v804 = vunpack.c.h.b16 %v695
    %v805 = vunpack.c.l.b16 %v696
    %v806 = vunpack.c.l.b16 %v697
    %v807 = vunpack.c.h.b16 %v697
    %v808 = vunpack.c.l.b16 %v698
    %v809 = vpack.c.b16 %v764, %v761
    %v810 = vpack.c.b16 %v765, %v762
    %v811 = vpack.c.b16 %v766, %v763
    %v812 = vpack.c.b16 %v770, %v767
    %v813 = vpack.c.b16 %v771, %v768
    %v814 = vpack.c.b16 %v772, %v769
    %v815 = vpack.c.b16 %v776, %v773
    %v816 = vpack.c.b16 %v777, %v774
    %v817 = vpack.c.b16 %v778, %v775
    %v818 = vpack.c.b16 %v782, %v779
    %v819 = vpack.c.b16 %v783, %v780
    %v820 = vpack.c.b16 %v784, %v781
    %v821 = vpack.c.b16 %v788, %v785
    %v822 = vpack.c.b16 %v789, %v786
    %v823 = vpack.c.b16 %v790, %v787
    %v824 = vpack.c.b16 %v794, %v791
    %v825 = vpack.c.b16 %v795, %v792
    %v826 = vpack.c.b16 %v796, %v793
    %v827 = vpack.c.b16 %v800, %v797
    %v828 = vpack.c.b16 %v801, %v798
    %v829 = vpack.c.b16 %v802, %v799
    %v830 = vpack.c.b16 %v806, %v803
    %v831 = vpack.c.b16 %v807, %v804
    %v832 = vpack.c.b16 %v808, %v805
    %857 = vmatprep.subr.bf16.mxu0 %v810
    %858 = vmatpush1.bf16.msra.mxu0 %v809
    %859 = vmatprep.subr.bf16.mxu0 %v813
    %860 = vmatpush1.bf16.msra.mxu0 %v812
    %861 = vmatprep.subr.bf16.mxu0 %v816
    %862 = vmatpush1.bf16.msra.mxu0 %v815
    %863 = vmatprep.subr.bf16.mxu0 %v819
    %864 = vmatpush1.bf16.msra.mxu0 %v818
    %865 = vmatprep.subr.bf16.mxu0 %v822
    %866 = vmatpush1.bf16.msra.mxu0 %v821
    %867 = vmatprep.subr.bf16.mxu0 %v825
    %868 = vmatpush1.bf16.msra.mxu0 %v824
    %869 = vmatprep.subr.bf16.mxu0 %v828
    %870 = vmatpush1.bf16.msra.mxu0 %v827
    %871 = vmatprep.subr.bf16.mxu0 %v831
    %872 = vmatpush1.bf16.msra.mxu0 %v830
    %873 = vmatprep.subr.bf16.mxu0 0
    %874 = vmatpush1.bf16.msra.mxu0 0
    %875 = vmatprep.subr.bf16.mxu0 0
    %876 = vmatpush1.bf16.msra.mxu0 0
    %877 = vmatprep.subr.bf16.mxu0 0
    %878 = vmatpush1.bf16.msra.mxu0 0
    %879 = vmatprep.subr.bf16.mxu0 0
    %880 = vmatpush1.bf16.msra.mxu0 0
    %881 = vmatprep.subr.bf16.mxu0 0
    %882 = vmatpush1.bf16.msra.mxu0 0
    %883 = vmatprep.subr.bf16.mxu0 0
    %884 = vmatpush1.bf16.msra.mxu0 0
    %885 = vmatprep.subr.bf16.mxu0 0
    %886 = vmatpush1.bf16.msra.mxu0 0
    %887 = vmatprep.subr.bf16.mxu0 0
    %888 = vmatpush1.bf16.msra.mxu0 0
    %889 = vmatprep.mubr.bf16.mxu0 0
    %890 = vmatmul.mubr.bf16.gmra.mrb[0].mxu0 %v728
    %v891 = vpop.f32.mrb[0].mxu0
    %v892 = vadd.f32 0.0, %v891
    %v893 = vpop.f32.mrb[0].mxu0
    %v894 = vadd.f32 0.0, %v893
    %v895 = vpop.f32.mrb[0].mxu0
    %v896 = vpop.f32.mrb[0].mxu0
    %897 = vdwg.mxu0
    %898 = vmatprep.subr.bf16.mxu0 0
    %899 = vmatpush1.bf16.msra.mxu0 %v811
    %900 = vmatprep.subr.bf16.mxu0 0
    %901 = vmatpush1.bf16.msra.mxu0 %v814
    %902 = vmatprep.subr.bf16.mxu0 0
    %903 = vmatpush1.bf16.msra.mxu0 %v817
    %904 = vmatprep.subr.bf16.mxu0 0
    %905 = vmatpush1.bf16.msra.mxu0 %v820
    %906 = vmatprep.subr.bf16.mxu0 0
    %907 = vmatpush1.bf16.msra.mxu0 %v823
    %908 = vmatprep.subr.bf16.mxu0 0
    %909 = vmatpush1.bf16.msra.mxu0 %v826
    %910 = vmatprep.subr.bf16.mxu0 0
    %911 = vmatpush1.bf16.msra.mxu0 %v829
    %912 = vmatprep.subr.bf16.mxu0 0
    %913 = vmatpush1.bf16.msra.mxu0 %v832
    %914 = vmatprep.subr.bf16.mxu0 0
    %915 = vmatpush1.bf16.msra.mxu0 0
    %916 = vmatprep.subr.bf16.mxu0 0
    %917 = vmatpush1.bf16.msra.mxu0 0
    %918 = vmatprep.subr.bf16.mxu0 0
    %919 = vmatpush1.bf16.msra.mxu0 0
    %920 = vmatprep.subr.bf16.mxu0 0
    %921 = vmatpush1.bf16.msra.mxu0 0
    %922 = vmatprep.subr.bf16.mxu0 0
    %923 = vmatpush1.bf16.msra.mxu0 0
    %924 = vmatprep.subr.bf16.mxu0 0
    %925 = vmatpush1.bf16.msra.mxu0 0
    %926 = vmatprep.subr.bf16.mxu0 0
    %927 = vmatpush1.bf16.msra.mxu0 0
    %928 = vmatprep.subr.bf16.mxu0 0
    %929 = vmatpush1.bf16.msra.mxu0 0
    %930 = vmatprep.mubr.bf16.mxu0 0
    %931 = vmatmul.mubr.bf16.gmra.mrb[0].mxu0 %v728
    %v932 = vpop.f32.mrb[0].mxu0
    %v933 = vadd.f32 0.0, %v932
    %v934 = vpop.f32.mrb[0].mxu0
    %v935 = vpop.f32.mrb[0].mxu0
    %v936 = vpop.f32.mrb[0].mxu0
    %937 = vdwg.mxu0
    %v938 = vadd.f32 %v568, %v892
    %v939 = vxor.u32 %v938, 2147483648
    %v940 = vmul.f32 %v939, 1.442695
    %v941 = vpow.pop %v940
    %v942 = vadd.f32 %v941, 1.0
    %v943 = vrcp.pop %v942
    %v944 = vmul.f32 1.0, %v943
    %v945 = vadd.f32 %v570, %v894
    %v946 = vxor.u32 %v945, 2147483648
    %v947 = vmul.f32 %v946, 1.442695
    %v948 = vpow.pop %v947
    %v949 = vadd.f32 %v948, 1.0
    %v950 = vrcp.pop %v949
    %v951 = vmul.f32 1.0, %v950
    %v952 = vadd.f32 %v933, %v718
    %v953 = vmul.f32 %v944, %v952
    %v954 = vadd.f32 %v640, %v953
    %v955 = vtanh.pop %v954
    %v956 = vsub.f32 1.0, %v951
    %v957 = vmul.f32 %v956, %v955
    %v958 = vmul.f32 %v951, %v727
    %v959 = vadd.f32 %v957, %v958
    %v960 = vpack.c.bf16 %v959, %v959
    %961 = vmatprep.subr.bf16.mxu0 %v810
    %962 = vmatpush1.bf16.msra.mxu0 %v809
    %963 = vmatprep.subr.bf16.mxu0 %v813
    %964 = vmatpush1.bf16.msra.mxu0 %v812
    %965 = vmatprep.subr.bf16.mxu0 %v816
    %966 = vmatpush1.bf16.msra.mxu0 %v815
    %967 = vmatprep.subr.bf16.mxu0 %v819
    %968 = vmatpush1.bf16.msra.mxu0 %v818
    %969 = vmatprep.subr.bf16.mxu0 %v822
    %970 = vmatpush1.bf16.msra.mxu0 %v821
    %971 = vmatprep.subr.bf16.mxu0 %v825
    %972 = vmatpush1.bf16.msra.mxu0 %v824
    %973 = vmatprep.subr.bf16.mxu0 %v828
    %974 = vmatpush1.bf16.msra.mxu0 %v827
    %975 = vmatprep.subr.bf16.mxu0 %v831
    %976 = vmatpush1.bf16.msra.mxu0 %v830
    %977 = vmatprep.subr.bf16.mxu0 0
    %978 = vmatpush1.bf16.msra.mxu0 0
    %979 = vmatprep.subr.bf16.mxu0 0
    %980 = vmatpush1.bf16.msra.mxu0 0
    %981 = vmatprep.subr.bf16.mxu0 0
    %982 = vmatpush1.bf16.msra.mxu0 0
    %983 = vmatprep.subr.bf16.mxu0 0
    %984 = vmatpush1.bf16.msra.mxu0 0
    %985 = vmatprep.subr.bf16.mxu0 0
    %986 = vmatpush1.bf16.msra.mxu0 0
    %987 = vmatprep.subr.bf16.mxu0 0
    %988 = vmatpush1.bf16.msra.mxu0 0
    %989 = vmatprep.subr.bf16.mxu0 0
    %990 = vmatpush1.bf16.msra.mxu0 0
    %991 = vmatprep.subr.bf16.mxu0 0
    %992 = vmatpush1.bf16.msra.mxu0 0
    %993 = vmatprep.mubr.bf16.mxu0 0
    %994 = vmatmul.mubr.bf16.gmra.mrb[0].mxu0 %v960
    %v995 = vpop.f32.mrb[0].mxu0
    %v996 = vadd.f32 0.0, %v995
    %v997 = vpop.f32.mrb[0].mxu0
    %v998 = vadd.f32 0.0, %v997
    %v999 = vpop.f32.mrb[0].mxu0
    %v1000 = vpop.f32.mrb[0].mxu0
    %1001 = vdwg.mxu0
    %1002 = vmatprep.subr.bf16.mxu0 0
    %1003 = vmatpush1.bf16.msra.mxu0 %v811
    %1004 = vmatprep.subr.bf16.mxu0 0
    %1005 = vmatpush1.bf16.msra.mxu0 %v814
    %1006 = vmatprep.subr.bf16.mxu0 0
    %1007 = vmatpush1.bf16.msra.mxu0 %v817
    %1008 = vmatprep.subr.bf16.mxu0 0
    %1009 = vmatpush1.bf16.msra.mxu0 %v820
    %1010 = vmatprep.subr.bf16.mxu0 0
    %1011 = vmatpush1.bf16.msra.mxu0 %v823
    %1012 = vmatprep.subr.bf16.mxu0 0
    %1013 = vmatpush1.bf16.msra.mxu0 %v826
    %1014 = vmatprep.subr.bf16.mxu0 0
    %1015 = vmatpush1.bf16.msra.mxu0 %v829
    %1016 = vmatprep.subr.bf16.mxu0 0
    %1017 = vmatpush1.bf16.msra.mxu0 %v832
    %1018 = vmatprep.subr.bf16.mxu0 0
    %1019 = vmatpush1.bf16.msra.mxu0 0
    %1020 = vmatprep.subr.bf16.mxu0 0
    %1021 = vmatpush1.bf16.msra.mxu0 0
    %1022 = vmatprep.subr.bf16.mxu0 0
    %1023 = vmatpush1.bf16.msra.mxu0 0
    %1024 = vmatprep.subr.bf16.mxu0 0
    %1025 = vmatpush1.bf16.msra.mxu0 0
    %1026 = vmatprep.subr.bf16.mxu0 0
    %1027 = vmatpush1.bf16.msra.mxu0 0
    %1028 = vmatprep.subr.bf16.mxu0 0
    %1029 = vmatpush1.bf16.msra.mxu0 0
    %1030 = vmatprep.subr.bf16.mxu0 0
    %1031 = vmatpush1.bf16.msra.mxu0 0
    %1032 = vmatprep.subr.bf16.mxu0 0
    %1033 = vmatpush1.bf16.msra.mxu0 0
    %1034 = vmatprep.mubr.bf16.mxu0 0
    %1035 = vmatmul.mubr.bf16.gmra.mrb[0].mxu0 %v960
    %v1036 = vpop.f32.mrb[0].mxu0
    %v1037 = vadd.f32 0.0, %v1036
    %v1038 = vpop.f32.mrb[0].mxu0
    %v1039 = vpop.f32.mrb[0].mxu0
    %v1040 = vpop.f32.mrb[0].mxu0
    %1041 = vdwg.mxu0
    %v1042 = vadd.f32 %v574, %v996
    %v1043 = vxor.u32 %v1042, 2147483648
    %v1044 = vmul.f32 %v1043, 1.442695
    %v1045 = vpow.pop %v1044
    %v1046 = vadd.f32 %v1045, 1.0
    %v1047 = vrcp.pop %v1046
    %v1048 = vmul.f32 1.0, %v1047
    %v1049 = vadd.f32 %v576, %v998
    %v1050 = vxor.u32 %v1049, 2147483648
    %v1051 = vmul.f32 %v1050, 1.442695
    %v1052 = vpow.pop %v1051
    %v1053 = vadd.f32 %v1052, 1.0
    %v1054 = vrcp.pop %v1053
    %v1055 = vmul.f32 1.0, %v1054
    %v1056 = vadd.f32 %v1037, %v718
    %v1057 = vmul.f32 %v1048, %v1056
    %v1058 = vadd.f32 %v645, %v1057
    %v1059 = vtanh.pop %v1058
    %v1060 = vsub.f32 1.0, %v1055
    %v1061 = vmul.f32 %v1060, %v1059
    %v1062 = vmul.f32 %v1055, %v959
    %v1063 = vadd.f32 %v1061, %v1062
    %v1064 = vpack.c.bf16 %v1063, %v1063
    %1065 = vmatprep.subr.bf16.mxu0 %v810
    %1066 = vmatpush1.bf16.msra.mxu0 %v809
    %1067 = vmatprep.subr.bf16.mxu0 %v813
    %1068 = vmatpush1.bf16.msra.mxu0 %v812
    %1069 = vmatprep.subr.bf16.mxu0 %v816
    %1070 = vmatpush1.bf16.msra.mxu0 %v815
    %1071 = vmatprep.subr.bf16.mxu0 %v819
    %1072 = vmatpush1.bf16.msra.mxu0 %v818
    %1073 = vmatprep.subr.bf16.mxu0 %v822
    %1074 = vmatpush1.bf16.msra.mxu0 %v821
    %1075 = vmatprep.subr.bf16.mxu0 %v825
    %1076 = vmatpush1.bf16.msra.mxu0 %v824
    %1077 = vmatprep.subr.bf16.mxu0 %v828
    %1078 = vmatpush1.bf16.msra.mxu0 %v827
    %1079 = vmatprep.subr.bf16.mxu0 %v831
    %1080 = vmatpush1.bf16.msra.mxu0 %v830
    %1081 = vmatprep.subr.bf16.mxu0 0
    %1082 = vmatpush1.bf16.msra.mxu0 0
    %1083 = vmatprep.subr.bf16.mxu0 0
    %1084 = vmatpush1.bf16.msra.mxu0 0
    %1085 = vmatprep.subr.bf16.mxu0 0
    %1086 = vmatpush1.bf16.msra.mxu0 0
    %1087 = vmatprep.subr.bf16.mxu0 0
    %1088 = vmatpush1.bf16.msra.mxu0 0
    %1089 = vmatprep.subr.bf16.mxu0 0
    %1090 = vmatpush1.bf16.msra.mxu0 0
    %1091 = vmatprep.subr.bf16.mxu0 0
    %1092 = vmatpush1.bf16.msra.mxu0 0
    %1093 = vmatprep.subr.bf16.mxu0 0
    %1094 = vmatpush1.bf16.msra.mxu0 0
    %1095 = vmatprep.subr.bf16.mxu0 0
    %1096 = vmatpush1.bf16.msra.mxu0 0
    %1097 = vmatprep.mubr.bf16.mxu0 0
    %1098 = vmatmul.mubr.bf16.gmra.mrb[0].mxu0 %v1064
    %v1099 = vpop.f32.mrb[0].mxu0
    %v1100 = vadd.f32 0.0, %v1099
    %v1101 = vpop.f32.mrb[0].mxu0
    %v1102 = vadd.f32 0.0, %v1101
    %v1103 = vpop.f32.mrb[0].mxu0
    %v1104 = vpop.f32.mrb[0].mxu0
    %1105 = vdwg.mxu0
    %1106 = vmatprep.subr.bf16.mxu0 0
    %1107 = vmatpush1.bf16.msra.mxu0 %v811
    %1108 = vmatprep.subr.bf16.mxu0 0
    %1109 = vmatpush1.bf16.msra.mxu0 %v814
    %1110 = vmatprep.subr.bf16.mxu0 0
    %1111 = vmatpush1.bf16.msra.mxu0 %v817
    %1112 = vmatprep.subr.bf16.mxu0 0
    %1113 = vmatpush1.bf16.msra.mxu0 %v820
    %1114 = vmatprep.subr.bf16.mxu0 0
    %1115 = vmatpush1.bf16.msra.mxu0 %v823
    %1116 = vmatprep.subr.bf16.mxu0 0
    %1117 = vmatpush1.bf16.msra.mxu0 %v826
    %1118 = vmatprep.subr.bf16.mxu0 0
    %1119 = vmatpush1.bf16.msra.mxu0 %v829
    %1120 = vmatprep.subr.bf16.mxu0 0
    %1121 = vmatpush1.bf16.msra.mxu0 %v832
    %1122 = vmatprep.subr.bf16.mxu0 0
    %1123 = vmatpush1.bf16.msra.mxu0 0
    %1124 = vmatprep.subr.bf16.mxu0 0
    %1125 = vmatpush1.bf16.msra.mxu0 0
    %1126 = vmatprep.subr.bf16.mxu0 0
    %1127 = vmatpush1.bf16.msra.mxu0 0
    %1128 = vmatprep.subr.bf16.mxu0 0
    %1129 = vmatpush1.bf16.msra.mxu0 0
    %1130 = vmatprep.subr.bf16.mxu0 0
    %1131 = vmatpush1.bf16.msra.mxu0 0
    %1132 = vmatprep.subr.bf16.mxu0 0
    %1133 = vmatpush1.bf16.msra.mxu0 0
    %1134 = vmatprep.subr.bf16.mxu0 0
    %1135 = vmatpush1.bf16.msra.mxu0 0
    %1136 = vmatprep.subr.bf16.mxu0 0
    %1137 = vmatpush1.bf16.msra.mxu0 0
    %1138 = vmatprep.mubr.bf16.mxu0 0
    %1139 = vmatmul.mubr.bf16.gmra.mrb[0].mxu0 %v1064
    %v1140 = vpop.f32.mrb[0].mxu0
    %v1141 = vadd.f32 0.0, %v1140
    %v1142 = vpop.f32.mrb[0].mxu0
    %v1143 = vpop.f32.mrb[0].mxu0
    %v1144 = vpop.f32.mrb[0].mxu0
    %1145 = vdwg.mxu0
    %v1146 = vadd.f32 %v578, %v1100
    %v1147 = vxor.u32 %v1146, 2147483648
    %v1148 = vmul.f32 %v1147, 1.442695
    %v1149 = vpow.pop %v1148
    %v1150 = vadd.f32 %v1149, 1.0
    %v1151 = vrcp.pop %v1150
    %v1152 = vmul.f32 1.0, %v1151
    %v1153 = vadd.f32 %v580, %v1102
    %v1154 = vxor.u32 %v1153, 2147483648
    %v1155 = vmul.f32 %v1154, 1.442695
    %v1156 = vpow.pop %v1155
    %v1157 = vadd.f32 %v1156, 1.0
    %v1158 = vrcp.pop %v1157
    %v1159 = vmul.f32 1.0, %v1158
    %v1160 = vadd.f32 %v1141, %v718
    %v1161 = vmul.f32 %v1152, %v1160
    %v1162 = vadd.f32 %v648, %v1161
    %v1163 = vtanh.pop %v1162
    %v1164 = vsub.f32 1.0, %v1159
    %v1165 = vmul.f32 %v1164, %v1163
    %v1166 = vmul.f32 %v1159, %v1063
    %v1167 = vadd.f32 %v1165, %v1166
    %v1168 = vpack.c.bf16 %v1167, %v1167
    %1169 = vmatprep.subr.bf16.mxu0 %v810
    %1170 = vmatpush1.bf16.msra.mxu0 %v809
    %1171 = vmatprep.subr.bf16.mxu0 %v813
    %1172 = vmatpush1.bf16.msra.mxu0 %v812
    %1173 = vmatprep.subr.bf16.mxu0 %v816
    %1174 = vmatpush1.bf16.msra.mxu0 %v815
    %1175 = vmatprep.subr.bf16.mxu0 %v819
    %1176 = vmatpush1.bf16.msra.mxu0 %v818
    %1177 = vmatprep.subr.bf16.mxu0 %v822
    %1178 = vmatpush1.bf16.msra.mxu0 %v821
    %1179 = vmatprep.subr.bf16.mxu0 %v825
    %1180 = vmatpush1.bf16.msra.mxu0 %v824
    %1181 = vmatprep.subr.bf16.mxu0 %v828
    %1182 = vmatpush1.bf16.msra.mxu0 %v827
    %1183 = vmatprep.subr.bf16.mxu0 %v831
    %1184 = vmatpush1.bf16.msra.mxu0 %v830
    %1185 = vmatprep.subr.bf16.mxu0 0
    %1186 = vmatpush1.bf16.msra.mxu0 0
    %1187 = vmatprep.subr.bf16.mxu0 0
    %1188 = vmatpush1.bf16.msra.mxu0 0
    %1189 = vmatprep.subr.bf16.mxu0 0
    %1190 = vmatpush1.bf16.msra.mxu0 0
    %1191 = vmatprep.subr.bf16.mxu0 0
    %1192 = vmatpush1.bf16.msra.mxu0 0
    %1193 = vmatprep.subr.bf16.mxu0 0
    %1194 = vmatpush1.bf16.msra.mxu0 0
    %1195 = vmatprep.subr.bf16.mxu0 0
    %1196 = vmatpush1.bf16.msra.mxu0 0
    %1197 = vmatprep.subr.bf16.mxu0 0
    %1198 = vmatpush1.bf16.msra.mxu0 0
    %1199 = vmatprep.subr.bf16.mxu0 0
    %1200 = vmatpush1.bf16.msra.mxu0 0
    %1201 = vmatprep.mubr.bf16.mxu0 0
    %1202 = vmatmul.mubr.bf16.gmra.mrb[0].mxu0 %v1168
    %v1203 = vpop.f32.mrb[0].mxu0
    %v1204 = vadd.f32 0.0, %v1203
    %v1205 = vpop.f32.mrb[0].mxu0
    %v1206 = vadd.f32 0.0, %v1205
    %v1207 = vpop.f32.mrb[0].mxu0
    %v1208 = vpop.f32.mrb[0].mxu0
    %1209 = vdwg.mxu0
    %1210 = vmatprep.subr.bf16.mxu0 0
    %1211 = vmatpush1.bf16.msra.mxu0 %v811
    %1212 = vmatprep.subr.bf16.mxu0 0
    %1213 = vmatpush1.bf16.msra.mxu0 %v814
    %1214 = vmatprep.subr.bf16.mxu0 0
    %1215 = vmatpush1.bf16.msra.mxu0 %v817
    %1216 = vmatprep.subr.bf16.mxu0 0
    %1217 = vmatpush1.bf16.msra.mxu0 %v820
    %1218 = vmatprep.subr.bf16.mxu0 0
    %1219 = vmatpush1.bf16.msra.mxu0 %v823
    %1220 = vmatprep.subr.bf16.mxu0 0
    %1221 = vmatpush1.bf16.msra.mxu0 %v826
    %1222 = vmatprep.subr.bf16.mxu0 0
    %1223 = vmatpush1.bf16.msra.mxu0 %v829
    %1224 = vmatprep.subr.bf16.mxu0 0
    %1225 = vmatpush1.bf16.msra.mxu0 %v832
    %1226 = vmatprep.subr.bf16.mxu0 0
    %1227 = vmatpush1.bf16.msra.mxu0 0
    %1228 = vmatprep.subr.bf16.mxu0 0
    %1229 = vmatpush1.bf16.msra.mxu0 0
    %1230 = vmatprep.subr.bf16.mxu0 0
    %1231 = vmatpush1.bf16.msra.mxu0 0
    %1232 = vmatprep.subr.bf16.mxu0 0
    %1233 = vmatpush1.bf16.msra.mxu0 0
    %1234 = vmatprep.subr.bf16.mxu0 0
    %1235 = vmatpush1.bf16.msra.mxu0 0
    %1236 = vmatprep.subr.bf16.mxu0 0
    %1237 = vmatpush1.bf16.msra.mxu0 0
    %1238 = vmatprep.subr.bf16.mxu0 0
    %1239 = vmatpush1.bf16.msra.mxu0 0
    %1240 = vmatprep.subr.bf16.mxu0 0
    %1241 = vmatpush1.bf16.msra.mxu0 0
    %1242 = vmatprep.mubr.bf16.mxu0 0
    %1243 = vmatmul.mubr.bf16.gmra.mrb[0].mxu0 %v1168
    %v1244 = vpop.f32.mrb[0].mxu0
    %v1245 = vadd.f32 0.0, %v1244
    %v1246 = vpop.f32.mrb[0].mxu0
    %v1247 = vpop.f32.mrb[0].mxu0
    %v1248 = vpop.f32.mrb[0].mxu0
    %1249 = vdwg.mxu0
    %v1250 = vadd.f32 %v584, %v1204
    %v1251 = vxor.u32 %v1250, 2147483648
    %v1252 = vmul.f32 %v1251, 1.442695
    %v1253 = vpow.pop %v1252
    %v1254 = vadd.f32 %v1253, 1.0
    %v1255 = vrcp.pop %v1254
    %v1256 = vmul.f32 1.0, %v1255
    %v1257 = vadd.f32 %v586, %v1206
    %v1258 = vxor.u32 %v1257, 2147483648
    %v1259 = vmul.f32 %v1258, 1.442695
    %v1260 = vpow.pop %v1259
    %v1261 = vadd.f32 %v1260, 1.0
    %v1262 = vrcp.pop %v1261
    %v1263 = vmul.f32 1.0, %v1262
    %v1264 = vadd.f32 %v1245, %v718
    %v1265 = vmul.f32 %v1256, %v1264
    %v1266 = vadd.f32 %v653, %v1265
    %v1267 = vtanh.pop %v1266
    %v1268 = vsub.f32 1.0, %v1263
    %v1269 = vmul.f32 %v1268, %v1267
    %v1270 = vmul.f32 %v1263, %v1167
    %v1271 = vadd.f32 %v1269, %v1270
    %v1272 = vpack.c.bf16 %v1271, %v1271
    %1273 = vmatprep.subr.bf16.mxu0 %v810
    %1274 = vmatpush1.bf16.msra.mxu0 %v809
    %1275 = vmatprep.subr.bf16.mxu0 %v813
    %1276 = vmatpush1.bf16.msra.mxu0 %v812
    %1277 = vmatprep.subr.bf16.mxu0 %v816
    %1278 = vmatpush1.bf16.msra.mxu0 %v815
    %1279 = vmatprep.subr.bf16.mxu0 %v819
    %1280 = vmatpush1.bf16.msra.mxu0 %v818
    %1281 = vmatprep.subr.bf16.mxu0 %v822
    %1282 = vmatpush1.bf16.msra.mxu0 %v821
    %1283 = vmatprep.subr.bf16.mxu0 %v825
    %1284 = vmatpush1.bf16.msra.mxu0 %v824
    %1285 = vmatprep.subr.bf16.mxu0 %v828
    %1286 = vmatpush1.bf16.msra.mxu0 %v827
    %1287 = vmatprep.subr.bf16.mxu0 %v831
    %1288 = vmatpush1.bf16.msra.mxu0 %v830
    %1289 = vmatprep.subr.bf16.mxu0 0
    %1290 = vmatpush1.bf16.msra.mxu0 0
    %1291 = vmatprep.subr.bf16.mxu0 0
    %1292 = vmatpush1.bf16.msra.mxu0 0
    %1293 = vmatprep.subr.bf16.mxu0 0
    %1294 = vmatpush1.bf16.msra.mxu0 0
    %1295 = vmatprep.subr.bf16.mxu0 0
    %1296 = vmatpush1.bf16.msra.mxu0 0
    %1297 = vmatprep.subr.bf16.mxu0 0
    %1298 = vmatpush1.bf16.msra.mxu0 0
    %1299 = vmatprep.subr.bf16.mxu0 0
    %1300 = vmatpush1.bf16.msra.mxu0 0
    %1301 = vmatprep.subr.bf16.mxu0 0
    %1302 = vmatpush1.bf16.msra.mxu0 0
    %1303 = vmatprep.subr.bf16.mxu0 0
    %1304 = vmatpush1.bf16.msra.mxu0 0
    %1305 = vmatprep.mubr.bf16.mxu0 0
    %1306 = vmatmul.mubr.bf16.gmra.mrb[0].mxu0 %v1272
    %v1307 = vpop.f32.mrb[0].mxu0
    %v1308 = vadd.f32 0.0, %v1307
    %v1309 = vpop.f32.mrb[0].mxu0
    %v1310 = vadd.f32 0.0, %v1309
    %v1311 = vpop.f32.mrb[0].mxu0
    %v1312 = vpop.f32.mrb[0].mxu0
    %1313 = vdwg.mxu0
    %1314 = vmatprep.subr.bf16.mxu0 0
    %1315 = vmatpush1.bf16.msra.mxu0 %v811
    %1316 = vmatprep.subr.bf16.mxu0 0
    %1317 = vmatpush1.bf16.msra.mxu0 %v814
    %1318 = vmatprep.subr.bf16.mxu0 0
    %1319 = vmatpush1.bf16.msra.mxu0 %v817
    %1320 = vmatprep.subr.bf16.mxu0 0
    %1321 = vmatpush1.bf16.msra.mxu0 %v820
    %1322 = vmatprep.subr.bf16.mxu0 0
    %1323 = vmatpush1.bf16.msra.mxu0 %v823
    %1324 = vmatprep.subr.bf16.mxu0 0
    %1325 = vmatpush1.bf16.msra.mxu0 %v826
    %1326 = vmatprep.subr.bf16.mxu0 0
    %1327 = vmatpush1.bf16.msra.mxu0 %v829
    %1328 = vmatprep.subr.bf16.mxu0 0
    %1329 = vmatpush1.bf16.msra.mxu0 %v832
    %1330 = vmatprep.subr.bf16.mxu0 0
    %1331 = vmatpush1.bf16.msra.mxu0 0
    %1332 = vmatprep.subr.bf16.mxu0 0
    %1333 = vmatpush1.bf16.msra.mxu0 0
    %1334 = vmatprep.subr.bf16.mxu0 0
    %1335 = vmatpush1.bf16.msra.mxu0 0
    %1336 = vmatprep.subr.bf16.mxu0 0
    %1337 = vmatpush1.bf16.msra.mxu0 0
    %1338 = vmatprep.subr.bf16.mxu0 0
    %1339 = vmatpush1.bf16.msra.mxu0 0
    %1340 = vmatprep.subr.bf16.mxu0 0
    %1341 = vmatpush1.bf16.msra.mxu0 0
    %1342 = vmatprep.subr.bf16.mxu0 0
    %1343 = vmatpush1.bf16.msra.mxu0 0
    %1344 = vmatprep.subr.bf16.mxu0 0
    %1345 = vmatpush1.bf16.msra.mxu0 0
    %1346 = vmatprep.mubr.bf16.mxu0 0
    %1347 = vmatmul.mubr.bf16.gmra.mrb[0].mxu0 %v1272
    %v1348 = vpop.f32.mrb[0].mxu0
    %v1349 = vadd.f32 0.0, %v1348
    %v1350 = vpop.f32.mrb[0].mxu0
    %v1351 = vpop.f32.mrb[0].mxu0
    %v1352 = vpop.f32.mrb[0].mxu0
    %1353 = vdwg.mxu0
    %v1354 = vadd.f32 %v588, %v1308
    %v1355 = vxor.u32 %v1354, 2147483648
    %v1356 = vmul.f32 %v1355, 1.442695
    %v1357 = vpow.pop %v1356
    %v1358 = vadd.f32 %v1357, 1.0
    %v1359 = vrcp.pop %v1358
    %v1360 = vmul.f32 1.0, %v1359
    %v1361 = vadd.f32 %v590, %v1310
    %v1362 = vxor.u32 %v1361, 2147483648
    %v1363 = vmul.f32 %v1362, 1.442695
    %v1364 = vpow.pop %v1363
    %v1365 = vadd.f32 %v1364, 1.0
    %v1366 = vrcp.pop %v1365
    %v1367 = vmul.f32 1.0, %v1366
    %v1368 = vadd.f32 %v1349, %v718
    %v1369 = vmul.f32 %v1360, %v1368
    %v1370 = vadd.f32 %v656, %v1369
    %v1371 = vtanh.pop %v1370
    %v1372 = vsub.f32 1.0, %v1367
    %v1373 = vmul.f32 %v1372, %v1371
    %v1374 = vmul.f32 %v1367, %v1271
    %v1375 = vadd.f32 %v1373, %v1374
    %v1376 = vpack.c.bf16 %v1375, %v1375
    %1377 = vmatprep.subr.bf16.mxu0 %v810
    %1378 = vmatpush1.bf16.msra.mxu0 %v809
    %1379 = vmatprep.subr.bf16.mxu0 %v813
    %1380 = vmatpush1.bf16.msra.mxu0 %v812
    %1381 = vmatprep.subr.bf16.mxu0 %v816
    %1382 = vmatpush1.bf16.msra.mxu0 %v815
    %1383 = vmatprep.subr.bf16.mxu0 %v819
    %1384 = vmatpush1.bf16.msra.mxu0 %v818
    %1385 = vmatprep.subr.bf16.mxu0 %v822
    %1386 = vmatpush1.bf16.msra.mxu0 %v821
    %1387 = vmatprep.subr.bf16.mxu0 %v825
    %1388 = vmatpush1.bf16.msra.mxu0 %v824
    %1389 = vmatprep.subr.bf16.mxu0 %v828
    %1390 = vmatpush1.bf16.msra.mxu0 %v827
    %1391 = vmatprep.subr.bf16.mxu0 %v831
    %1392 = vmatpush1.bf16.msra.mxu0 %v830
    %1393 = vmatprep.subr.bf16.mxu0 0
    %1394 = vmatpush1.bf16.msra.mxu0 0
    %1395 = vmatprep.subr.bf16.mxu0 0
    %1396 = vmatpush1.bf16.msra.mxu0 0
    %1397 = vmatprep.subr.bf16.mxu0 0
    %1398 = vmatpush1.bf16.msra.mxu0 0
    %1399 = vmatprep.subr.bf16.mxu0 0
    %1400 = vmatpush1.bf16.msra.mxu0 0
    %1401 = vmatprep.subr.bf16.mxu0 0
    %1402 = vmatpush1.bf16.msra.mxu0 0
    %1403 = vmatprep.subr.bf16.mxu0 0
    %1404 = vmatpush1.bf16.msra.mxu0 0
    %1405 = vmatprep.subr.bf16.mxu0 0
    %1406 = vmatpush1.bf16.msra.mxu0 0
    %1407 = vmatprep.subr.bf16.mxu0 0
    %1408 = vmatpush1.bf16.msra.mxu0 0
    %1409 = vmatprep.mubr.bf16.mxu0 0
    %1410 = vmatmul.mubr.bf16.gmra.mrb[0].mxu0 %v1376
    %v1411 = vpop.f32.mrb[0].mxu0
    %v1412 = vadd.f32 0.0, %v1411
    %v1413 = vpop.f32.mrb[0].mxu0
    %v1414 = vadd.f32 0.0, %v1413
    %v1415 = vpop.f32.mrb[0].mxu0
    %v1416 = vpop.f32.mrb[0].mxu0
    %1417 = vdwg.mxu0
    %1418 = vmatprep.subr.bf16.mxu0 0
    %1419 = vmatpush1.bf16.msra.mxu0 %v811
    %1420 = vmatprep.subr.bf16.mxu0 0
    %1421 = vmatpush1.bf16.msra.mxu0 %v814
    %1422 = vmatprep.subr.bf16.mxu0 0
    %1423 = vmatpush1.bf16.msra.mxu0 %v817
    %1424 = vmatprep.subr.bf16.mxu0 0
    %1425 = vmatpush1.bf16.msra.mxu0 %v820
    %1426 = vmatprep.subr.bf16.mxu0 0
    %1427 = vmatpush1.bf16.msra.mxu0 %v823
    %1428 = vmatprep.subr.bf16.mxu0 0
    %1429 = vmatpush1.bf16.msra.mxu0 %v826
    %1430 = vmatprep.subr.bf16.mxu0 0
    %1431 = vmatpush1.bf16.msra.mxu0 %v829
    %1432 = vmatprep.subr.bf16.mxu0 0
    %1433 = vmatpush1.bf16.msra.mxu0 %v832
    %1434 = vmatprep.subr.bf16.mxu0 0
    %1435 = vmatpush1.bf16.msra.mxu0 0
    %1436 = vmatprep.subr.bf16.mxu0 0
    %1437 = vmatpush1.bf16.msra.mxu0 0
    %1438 = vmatprep.subr.bf16.mxu0 0
    %1439 = vmatpush1.bf16.msra.mxu0 0
    %1440 = vmatprep.subr.bf16.mxu0 0
    %1441 = vmatpush1.bf16.msra.mxu0 0
    %1442 = vmatprep.subr.bf16.mxu0 0
    %1443 = vmatpush1.bf16.msra.mxu0 0
    %1444 = vmatprep.subr.bf16.mxu0 0
    %1445 = vmatpush1.bf16.msra.mxu0 0
    %1446 = vmatprep.subr.bf16.mxu0 0
    %1447 = vmatpush1.bf16.msra.mxu0 0
    %1448 = vmatprep.subr.bf16.mxu0 0
    %1449 = vmatpush1.bf16.msra.mxu0 0
    %1450 = vmatprep.mubr.bf16.mxu0 0
    %1451 = vmatmul.mubr.bf16.gmra.mrb[0].mxu0 %v1376
    %v1452 = vpop.f32.mrb[0].mxu0
    %v1453 = vadd.f32 0.0, %v1452
    %v1454 = vpop.f32.mrb[0].mxu0
    %v1455 = vpop.f32.mrb[0].mxu0
    %v1456 = vpop.f32.mrb[0].mxu0
    %1457 = vdwg.mxu0
    %v1458 = vadd.f32 %v594, %v1412
    %v1459 = vxor.u32 %v1458, 2147483648
    %v1460 = vmul.f32 %v1459, 1.442695
    %v1461 = vpow.pop %v1460
    %v1462 = vadd.f32 %v1461, 1.0
    %v1463 = vrcp.pop %v1462
    %v1464 = vmul.f32 1.0, %v1463
    %v1465 = vadd.f32 %v596, %v1414
    %v1466 = vxor.u32 %v1465, 2147483648
    %v1467 = vmul.f32 %v1466, 1.442695
    %v1468 = vpow.pop %v1467
    %v1469 = vadd.f32 %v1468, 1.0
    %v1470 = vrcp.pop %v1469
    %v1471 = vmul.f32 1.0, %v1470
    %v1472 = vadd.f32 %v1453, %v718
    %v1473 = vmul.f32 %v1464, %v1472
    %v1474 = vadd.f32 %v661, %v1473
    %v1475 = vtanh.pop %v1474
    %v1476 = vsub.f32 1.0, %v1471
    %v1477 = vmul.f32 %v1476, %v1475
    %v1478 = vmul.f32 %v1471, %v1375
    %v1479 = vadd.f32 %v1477, %v1478
    %v1480 = vpack.c.bf16 %v1479, %v1479
    %1481 = vmatprep.subr.bf16.mxu0 %v810
    %1482 = vmatpush1.bf16.msra.mxu0 %v809
    %1483 = vmatprep.subr.bf16.mxu0 %v813
    %1484 = vmatpush1.bf16.msra.mxu0 %v812
    %1485 = vmatprep.subr.bf16.mxu0 %v816
    %1486 = vmatpush1.bf16.msra.mxu0 %v815
    %1487 = vmatprep.subr.bf16.mxu0 %v819
    %1488 = vmatpush1.bf16.msra.mxu0 %v818
    %1489 = vmatprep.subr.bf16.mxu0 %v822
    %1490 = vmatpush1.bf16.msra.mxu0 %v821
    %1491 = vmatprep.subr.bf16.mxu0 %v825
    %1492 = vmatpush1.bf16.msra.mxu0 %v824
    %1493 = vmatprep.subr.bf16.mxu0 %v828
    %1494 = vmatpush1.bf16.msra.mxu0 %v827
    %1495 = vmatprep.subr.bf16.mxu0 %v831
    %1496 = vmatpush1.bf16.msra.mxu0 %v830
    %1497 = vmatprep.subr.bf16.mxu0 0
    %1498 = vmatpush1.bf16.msra.mxu0 0
    %1499 = vmatprep.subr.bf16.mxu0 0
    %1500 = vmatpush1.bf16.msra.mxu0 0
    %1501 = vmatprep.subr.bf16.mxu0 0
    %1502 = vmatpush1.bf16.msra.mxu0 0
    %1503 = vmatprep.subr.bf16.mxu0 0
    %1504 = vmatpush1.bf16.msra.mxu0 0
    %1505 = vmatprep.subr.bf16.mxu0 0
    %1506 = vmatpush1.bf16.msra.mxu0 0
    %1507 = vmatprep.subr.bf16.mxu0 0
    %1508 = vmatpush1.bf16.msra.mxu0 0
    %1509 = vmatprep.subr.bf16.mxu0 0
    %1510 = vmatpush1.bf16.msra.mxu0 0
    %1511 = vmatprep.subr.bf16.mxu0 0
    %1512 = vmatpush1.bf16.msra.mxu0 0
    %1513 = vmatprep.mubr.bf16.mxu0 0
    %1514 = vmatmul.mubr.bf16.gmra.mrb[0].mxu0 %v1480
    %v1515 = vpop.f32.mrb[0].mxu0
    %v1516 = vadd.f32 0.0, %v1515
    %v1517 = vpop.f32.mrb[0].mxu0
    %v1518 = vadd.f32 0.0, %v1517
    %v1519 = vpop.f32.mrb[0].mxu0
    %v1520 = vpop.f32.mrb[0].mxu0
    %1521 = vdwg.mxu0
    %1522 = vmatprep.subr.bf16.mxu0 0
    %1523 = vmatpush1.bf16.msra.mxu0 %v811
    %1524 = vmatprep.subr.bf16.mxu0 0
    %1525 = vmatpush1.bf16.msra.mxu0 %v814
    %1526 = vmatprep.subr.bf16.mxu0 0
    %1527 = vmatpush1.bf16.msra.mxu0 %v817
    %1528 = vmatprep.subr.bf16.mxu0 0
    %1529 = vmatpush1.bf16.msra.mxu0 %v820
    %1530 = vmatprep.subr.bf16.mxu0 0
    %1531 = vmatpush1.bf16.msra.mxu0 %v823
    %1532 = vmatprep.subr.bf16.mxu0 0
    %1533 = vmatpush1.bf16.msra.mxu0 %v826
    %1534 = vmatprep.subr.bf16.mxu0 0
    %1535 = vmatpush1.bf16.msra.mxu0 %v829
    %1536 = vmatprep.subr.bf16.mxu0 0
    %1537 = vmatpush1.bf16.msra.mxu0 %v832
    %1538 = vmatprep.subr.bf16.mxu0 0
    %1539 = vmatpush1.bf16.msra.mxu0 0
    %1540 = vmatprep.subr.bf16.mxu0 0
    %1541 = vmatpush1.bf16.msra.mxu0 0
    %1542 = vmatprep.subr.bf16.mxu0 0
    %1543 = vmatpush1.bf16.msra.mxu0 0
    %1544 = vmatprep.subr.bf16.mxu0 0
    %1545 = vmatpush1.bf16.msra.mxu0 0
    %1546 = vmatprep.subr.bf16.mxu0 0
    %1547 = vmatpush1.bf16.msra.mxu0 0
    %1548 = vmatprep.subr.bf16.mxu0 0
    %1549 = vmatpush1.bf16.msra.mxu0 0
    %1550 = vmatprep.subr.bf16.mxu0 0
    %1551 = vmatpush1.bf16.msra.mxu0 0
    %1552 = vmatprep.subr.bf16.mxu0 0
    %1553 = vmatpush1.bf16.msra.mxu0 0
    %1554 = vmatprep.mubr.bf16.mxu0 0
    %1555 = vmatmul.mubr.bf16.gmra.mrb[0].mxu0 %v1480
    %v1556 = vpop.f32.mrb[0].mxu0
    %v1557 = vadd.f32 0.0, %v1556
    %v1558 = vpop.f32.mrb[0].mxu0
    %v1559 = vpop.f32.mrb[0].mxu0
    %v1560 = vpop.f32.mrb[0].mxu0
    %1561 = vdwg.mxu0
    %v1562 = vadd.f32 %v598, %v1516
    %v1563 = vxor.u32 %v1562, 2147483648
    %v1564 = vmul.f32 %v1563, 1.442695
    %v1565 = vpow.pop %v1564
    %v1566 = vadd.f32 %v1565, 1.0
    %v1567 = vrcp.pop %v1566
    %v1568 = vmul.f32 1.0, %v1567
    %v1569 = vadd.f32 %v600, %v1518
    %v1570 = vxor.u32 %v1569, 2147483648
    %v1571 = vmul.f32 %v1570, 1.442695
    %v1572 = vpow.pop %v1571
    %v1573 = vadd.f32 %v1572, 1.0
    %v1574 = vrcp.pop %v1573
    %v1575 = vmul.f32 1.0, %v1574
    %v1576 = vadd.f32 %v1557, %v718
    %v1577 = vmul.f32 %v1568, %v1576
    %v1578 = vadd.f32 %v664, %v1577
    %v1579 = vtanh.pop %v1578
    %v1580 = vsub.f32 1.0, %v1575
    %v1581 = vmul.f32 %v1580, %v1579
    %v1582 = vmul.f32 %v1575, %v1479
    %v1583 = vadd.f32 %v1581, %v1582
    %v1584 = vld [vmem:[%s6] sm:$0x1]
    %v1586 = vlaneseq
    %v1587 = vshrl.u32 %v1586, 7
    %v1588 = vsub.s32 0, %v1587
    %v1589 = vrot.slane %v1584, %v1588
    %v1591 = vmul.f32 %v1583, %v1589
    %1592 = vadd.xlane.f32.xlu0 %v1591
    %v1593 = vpop.xlane.xlu0 %1592
    %s1594 = sld [smem:[#allocation3]]
    %v1595 = vstv %s1594
    %v1596 = vadd.f32 %v1593, %v1595
    %v1597 = vxor.u32 %v1596, 2147483648
    %v1598 = vmul.f32 %v1597, 1.442695
    %v1599 = vpow.pop %v1598
    %v1600 = vadd.f32 %v1599, 1.0
    %v1601 = vrcp.pop %v1600
    %v1602 = vmul.f32 1.0, %v1601
    %1603 = vst [vmem:[#allocation12] sm:$0xff] %v1602
    // Predicated region
    $region50: #{tpu_custom_call.1} parent=1 // pred_check
      _
    $region51: #{tpu_custom_call.1} parent=1 // pred_check_branch
      %1605 = sbr.rel (0) target = $region53
    $region52: #{tpu_custom_call.1} parent=1 // pred_region
      %s1607 = ssub.s32 128, 128
      %1608 = vsyncadd [#allocation6], %s1607
      %s1610 = sshll.u32 [#allocation12], 4
      %s1611 = int_to_ptr.vmem [resolvable:$true] %s1610
      %1613 = dma.vmem_to_hbm [thread:$0]  %s1611, 128, %s8, [#allocation6]
    $region53: #{tpu_custom_call.1} parent=1 // pred_fallthru
      _
    // Predicated region
    $region54: #{tpu_custom_call.1} parent=1 // pred_check
      _
    $region55: #{tpu_custom_call.1} parent=1 // pred_check_branch
      %1615 = sbr.rel (0) target = $region57
    $region56: #{tpu_custom_call.1} parent=1 // pred_region
      %1616 = dma.done [#allocation6], 128
    $region57: #{tpu_custom_call.1} parent=1 // pred_fallthru
      _
    %1617 = vsyncpa [#allocation5], 1
    %1618 = vsyncpa [#allocation10], 1
    %1619 = vsyncpa [#allocation6], 1
    %1620 = vsyncpa [#allocation7], 1

</llo_original>
